<compile_context>
chip_gen: v5e
topology: v5e:2x2
jax: 0.10.0
libtpu: 0.0.40
codegen_flags: <defaults>
</compile_context>

<pallas_src>
import functools

import jax
import jax.numpy as jnp
from jax import lax
from jax.experimental import pallas as pl
from jax.experimental.pallas import tpu as pltpu


def _round_up(x, m):
    return ((x + m - 1) // m) * m


def _cdiv(a, b):
    return (a + b - 1) // b


def _tpu_info():
    """(has_two_tensorcores, per_core_vmem_bytes) with conservative fallbacks."""
    vmem_cap = 64 << 20                 # conservative default (v7x per-TC VMEM)
    multicore = False
    try:
        info = pltpu.get_tpu_info()
        vmem_cap = int(getattr(info, "vmem_capacity_bytes", vmem_cap))
    except Exception:
        pass
    try:
        kind = jax.devices()[0].device_kind.lower()
        multicore = "v7" in kind        # v7x: 2 TensorCores per chip
        if "v5" in kind or "v6" in kind:
            vmem_cap = max(vmem_cap, 128 << 20)
    except Exception:
        pass
    return multicore, vmem_cap


# ----------------------------------------------------------------------------
# Fused stride-1 conv kernel: one padded image per grid step.
#   - reads the padded activation once (no materialized im2col)
#   - kh*kw MXU tap-matmuls per output row, f32 accumulation
#   - fused bias + ReLU / Sigmooid epilogue, exact (unpadded) channel writes
# ----------------------------------------------------------------------------
def _fused_conv_kernel(x_ref, w_ref, b_ref, o_ref, *, kh, kw, act):
    """x_ref: (Hp, Wp, Cin) bf16; w_ref: (kh, kw, Cin, Nc) bf16;
    b_ref: (1, Nc) f32;  o_ref: (Ho, Wo, Nc) out_dtype."""
    h_out, w_out, n_ch = o_ref.shape
    bias = b_ref[...]                                        # (1, Nc) f32
    taps = [[w_ref[i, j] for j in range(kw)] for i in range(kh)]  # hoisted loads

    @pl.loop(0, h_out)
    def _(y):
        acc = jnp.zeros((w_out, n_ch), jnp.float32)
        for i in range(kh):
            row = x_ref[y + i]                               # (Wp, Cin) bf16
            for j in range(kw):
                acc = acc + jnp.dot(row[j:j + w_out, :], taps[i][j],
                                    preferred_element_type=jnp.float32)
        acc = acc + bias
        if act == "relu":
            acc = jnp.maximum(acc, 0.0)
        elif act == "sigmoid":
            acc = jax.nn.sigmoid(acc)
        o_ref[y] = acc.astype(o_ref.dtype)


def _fused_conv_stride1(xpad, w_taps, b, act, out_dtype, vmem_cap):
    """xpad: (N, Hp, Wp, Cin) bf16; w_taps: (kh, kw, Cin, Nc) bf16."""
    n, hp, wp, cin = xpad.shape
    kh, kw, _, n_ch = w_taps.shape
    ho, wo = hp - kh + 1, wp - kw + 1

    x_flat = xpad.reshape(n * hp, wp, cin)                   # free reshape
    b2 = b.astype(jnp.float32).reshape(1, n_ch)
    out_bytes = jnp.dtype(out_dtype).itemsize

    est = (2 * hp * wp * cin * 2 + 2 * ho * wo * n_ch * out_bytes
           + 2 * kh * kw * cin * n_ch * 2 + 2 * n_ch * 4)
    vmem_limit = min(max(2 * est, 16 << 20), int(0.6 * vmem_cap))
    cost = pl.CostEstimate(
        flops=2 * n * ho * wo * kh * kw * cin * n_ch,
        transcendentals=(n * ho * wo * n_ch if act == "sigmoid" else 0),
        bytes_accessed=(n * hp * wp * cin * 2 + kh * kw * cin * n_ch * 2
                        + n_ch * 4 + n * ho * wo * n_ch * out_bytes),
    )

    kernel = functools.partial(_fused_conv_kernel, kh=kh, kw=kw, act=act)
    out = pl.pallas_call(
        kernel,
        out_shape=jax.ShapeDtypeStruct((n * ho, wo, n_ch), out_dtype),
        grid_spec=pltpu.PrefetchScalarGridSpec(
            num_scalar_prefetch=0,
            grid=(n,),
            in_specs=[
                pl.BlockSpec((hp, wp, cin), lambda i: (i, 0, 0)),
                pl.BlockSpec((kh, kw, cin, n_ch), lambda i: (0, 0, 0, 0)),
                pl.BlockSpec((1, n_ch), lambda i: (0, 0)),
            ],
            out_specs=pl.BlockSpec((ho, wo, n_ch), lambda i: (i, 0, 0)),
        ),
        compiler_params=pltpu.CompilerParams(
            dimension_semantics=("parallel",),
            vmem_limit_bytes=vmem_limit,
        ),
        cost_estimate=cost,
    )(x_flat, w_taps, b2)
    return out.reshape(n, ho, wo, n_ch)


# ----------------------------------------------------------------------------
# Fallback path (only when a full padded image does not fit the VMEM budget):
# materialized im2col + tiled GEMM with fused bias/activation.
# ----------------------------------------------------------------------------
def _matmul_bias_act_kernel(x_ref, w_ref, b_ref, o_ref, *, act):
    acc = jnp.dot(x_ref[...], w_ref[...], preferred_element_type=jnp.float32)
    acc = acc + b_ref[...]
    if act == "relu":
        acc = jnp.maximum(acc, 0.0)
    elif act == "sigmoid":
        acc = jax.nn.sigmoid(acc)
    o_ref[...] = acc.astype(o_ref.dtype)


def _pallas_matmul_bias_act(patches, w, b, act, out_dtype, multicore, vmem_cap):
    M, K0 = patches.shape
    _, N0 = w.shape

    # Lane-dense N and K (no-op when already aligned).
    Np = _round_up(N0, 128)
    Kp = _round_up(K0, 128)
    if Np != N0:
        w = jnp.pad(w, ((0, 0), (0, Np - N0)))
        b = jnp.pad(b, (0, Np - N0))
    if Kp != K0:
        w = jnp.pad(w, ((0, Kp - K0), (0, 0)))
        patches = jnp.pad(patches, ((0, 0), (0, Kp - K0)))

    patches = patches.astype(jnp.bfloat16)
    w = w.astype(jnp.bfloat16)
    b = b.astype(jnp.float32).reshape(1, Np)
    out_bytes = jnp.dtype(out_dtype).itemsize

    def step_vmem(tm):
        return 2 * (tm * Kp * 2 + tm * Np * 4) + 2 * (Kp * Np * 2 + Np * 4)

    # Generation-aware M tiling: single tile for small M on 1-TC chips, two
    # tiles only when there are two TensorCores to feed, otherwise 1024 rows.
    if M <= 1024:
        if multicore and M >= 256:
            tile_m = _round_up(_cdiv(M, 2), 16)
        else:
            tile_m = _round_up(M, 16)
    else:
        tile_m = 1024
        while tile_m > 128 and step_vmem(tile_m) > int(0.4 * vmem_cap):
            tile_m //= 2
    M_pad = _round_up(M, tile_m)
    if M_pad != M:
        patches = jnp.pad(patches, ((0, M_pad - M), (0, 0)))

    cost = pl.CostEstimate(
        flops=2 * M_pad * Kp * Np,
        transcendentals=(M_pad * Np if act == "sigmoid" else 0),
        bytes_accessed=M_pad * Kp * 2 + Kp * Np * 2 + Np * 4 + M_pad * Np * out_bytes,
    )
    vmem_limit = min(max(step_vmem(tile_m) + (4 << 20), 16 << 20),
                     int(0.6 * vmem_cap))

    kernel = functools.partial(_matmul_bias_act_kernel, act=act)
    out = pl.pallas_call(
        kernel,
        out_shape=jax.ShapeDtypeStruct((M_pad, Np), out_dtype),
        grid_spec=pltpu.PrefetchScalarGridSpec(
            num_scalar_prefetch=0,
            grid=(M_pad // tile_m,),
            in_specs=[
                pl.BlockSpec((tile_m, Kp), lambda i: (i, 0)),
                pl.BlockSpec((Kp, Np), lambda i: (0, 0)),
                pl.BlockSpec((1, Np), lambda i: (0, 0)),
            ],
            out_specs=pl.BlockSpec((tile_m, Np), lambda i: (i, 0)),
        ),
        compiler_params=pltpu.CompilerParams(
            dimension_semantics=("parallel",),
            vmem_limit_bytes=vmem_limit,
        ),
        cost_estimate=cost,
    )(patches, w, b)
    if M_pad != M or Np != N0:
        out = out[:M, :N0]
    return out


def _im2col(x_pad, kh, kw):
    """x_pad: (N, Hp, Wp, C) -> ((N*H*W, kh*kw*C), (N, H, W)); stride-1 windows."""
    n, hp, wp, c = x_pad.shape
    h, w = hp - kh + 1, wp - kw + 1
    cols = []
    for i in range(kh):
        for j in range(kw):
            cols.append(x_pad[:, i:i + h, j:j + w, :])
    patches = jnp.concatenate(cols, axis=-1)
    return patches.reshape(n * h * w, kh * kw * c), (n, h, w)


# ----------------------------------------------------------------------------
# Layer wrappers
# ----------------------------------------------------------------------------
def _conv_stride1(x_nhwc, w_taps, b, pad, act, out_dtype):
    """Generic stride-1 conv (NHWC).  w_taps: (kh, kw, Cin, Nc)."""
    multicore, vmem_cap = _tpu_info()
    x = x_nhwc.astype(jnp.bfloat16)                 # bf16 BEFORE padding
    w_taps = w_taps.astype(jnp.bfloat16)
    xpad = jnp.pad(x, ((0, 0), (pad, pad), (pad, pad), (0, 0)))
    n, hp, wp, cin = xpad.shape
    kh, kw, _, n_ch = w_taps.shape
    ho, wo = hp - kh + 1, wp - kw + 1

    out_bytes = jnp.dtype(out_dtype).itemsize
    est = (2 * hp * wp * cin * 2 + 2 * ho * wo * n_ch * out_bytes
           + 2 * kh * kw * cin * n_ch * 2)
    if est <= int(0.35 * vmem_cap):
        return _fused_conv_stride1(xpad, w_taps, b, act, out_dtype, vmem_cap)

    # TODO(synk): row-tiled halo-DMA variant of the fused kernel would avoid
    # the materialized im2col (and the lane-padded small-Cout output) here too.
    patches, _ = _im2col(xpad, kh, kw)
    w2d = w_taps.reshape(kh * kw * cin, n_ch)
    out = _pallas_matmul_bias_act(patches, w2d, b, act, out_dtype,
                                  multicore, vmem_cap)
    return out.reshape(n, ho, wo, n_ch)


def conv_transpose2d(x_nhwc, wt, b, act, out_dtype):
    """PyTorch ConvTranspose2d(k=4, s=2, p=1) as a sub-pixel 2x2 stride-1 conv
    (single fused kernel) followed by an interleave + crop pixel shuffle.

    Output phase (ry, rx) at (2py+ry, 2px+rx) is a 2x2 conv over the pad-1
    input using taps ky = 3 - ry - 2*dy (same in x), read at patch
    (py+ry, px+rx).  Phases are emitted in channel groups ordered by the
    sub-position (sy, sx) = (1-ry, 1-rx), so a plain 2x interleave followed by
    a static crop [1 : 2h+1] recovers the PyTorch output layout.
    """
    cin, cout, kh, kw = wt.shape
    assert kh == 4 and kw == 4
    n, h, w_, c = x_nhwc.shape
    assert c == cin

    wk = jnp.transpose(wt, (2, 3, 0, 1))            # (ky, kx, Cin, Cout)
    rows = []
    for dy in range(2):
        cols = []
        for dx in range(2):
            groups = [wk[2 + sy - 2 * dy, 2 + sx - 2 * dx]
                      for sy in range(2) for sx in range(2)]
            cols.append(jnp.concatenate(groups, axis=-1))    # (Cin, 4*Cout)
        rows.append(jnp.stack(cols, axis=0))                  # (2, Cin, 4*Cout)
    w_taps = jnp.stack(rows, axis=0)                           # (2, 2, Cin, 4*Cout)
    b4 = jnp.tile(b, 4)

    y = _conv_stride1(x_nhwc, w_taps, b4, 1, act, out_dtype)  # (n, h+1, w+1, 4*Cout)
    y = y.reshape(n, h + 1, w_ + 1, 2, 2, cout)
    y = jnp.transpose(y, (0, 1, 3, 2, 4, 5)).reshape(n, 2 * h + 2, 2 * w_ + 2, cout)
    return y[:, 1:2 * h + 1, 1:2 * w_ + 1, :]


def conv2d(x_nhwc, w, b, pad, act, out_dtype):
    """PyTorch Conv2d (stride 1).  w: (Cout, Cin, Kh, Kw)."""
    w_taps = jnp.transpose(w, (2, 3, 1, 0))          # (Kh, Kw, Cin, Cout)
    return _conv_stride1(x_nhwc, w_taps, b, pad, act, out_dtype)


# ----------------------------------------------------------------------------
# Decoder
# ----------------------------------------------------------------------------
def init_decoder_params(key, out_channels=3, hidden_channels=128, z_dim=64):
    ks = jax.random.split(key, 6)

    def u(k, shape, fan_in):
        bound = 1.0 / jnp.sqrt(jnp.float32(fan_in))
        return jax.random.uniform(k, shape, jnp.float32, -bound, bound)

    return {
        "wt1": u(ks[0], (z_dim, hidden_channels, 4, 4), z_dim * 16),
        "b1": u(ks[1], (hidden_channels,), z_dim * 16),
        "wt2": u(ks[2], (hidden_channels, hidden_channels, 4, 4),
                 hidden_channels * 16),
        "b2": u(ks[3], (hidden_channels,), hidden_channels * 16),
        "w3": u(ks[4], (out_channels, hidden_channels, 3, 3),
                hidden_channels * 9),
        "b3": u(ks[5], (out_channels,), hidden_channels * 9),
    }


@jax.jit
def decoder_forward(z_nchw, params):
    x = jnp.transpose(z_nchw, (0, 2, 3, 1))           # NCHW -> NHWC
    x = conv_transpose2d(x, params["wt1"], params["b1"], "relu", jnp.bfloat16)
    x = conv_transpose2d(x, params["wt2"], params["b2"], "relu", jnp.bfloat16)
    x = conv2d(x, params["w3"], params["b3"], 1, "sigmoid", jnp.float32)
    return jnp.transpose(x, (0, 3, 1, 2))              # NHWC -> NCHW (PyTorch)


def reference_forward(z_nchw, params):
    """Pure-XLA reference with matching numerics (bf16 MXU inputs, f32 acc)."""
    dn = ("NHWC", "HWIO", "NHWC")

    def ct(x, wt, b):
        w = jnp.transpose(wt[:, :, ::-1, ::-1], (2, 3, 0, 1))
        y = lax.conv_general_dilated(
            x.astype(jnp.bfloat16), w.astype(jnp.bfloat16), (1, 1),
            [(2, 2), (2, 2)], lhs_dilation=(2, 2), dimension_numbers=dn,
            preferred_element_type=jnp.float32)
        return jax.nn.relu(y + b)

    x = jnp.transpose(z_nchw, (0, 2, 3, 1))
    x = ct(x, params["wt1"], params["b1"])
    x = ct(x, params["wt2"], params["b2"])
    w = jnp.transpose(params["w3"], (2, 3, 1, 0))
    y = lax.conv_general_dilated(
        x.astype(jnp.bfloat16), w.astype(jnp.bfloat16), (1, 1),
        [(1, 1), (1, 1)], dimension_numbers=dn,
        preferred_element_type=jnp.float32)
    x = jax.nn.sigmoid(y + params["b3"])
    return jnp.transpose(x, (0, 3, 1, 2))


if __name__ == "__main__":
    # Small shapes: batch=2, z_dim=16, hidden=32, out_channels=3, latent 8x8.
    OUT_C, HIDDEN, Z_DIM = 3, 32, 16
    key = jax.random.PRNGKey(0)
    kp, kz = jax.random.split(key)
    params = init_decoder_params(kp, OUT_C, HIDDEN, Z_DIM)
    z = jax.random.normal(kz, (2, Z_DIM, 8, 8), jnp.float32)   # NCHW like PyTorch

    out = jax.block_until_ready(decoder_forward(z, params))
    assert out.shape == (2, OUT_C, 32, 32), out.shape

    ref = jax.block_until_ready(reference_forward(z, params))
    err = float(jnp.max(jnp.abs(out - ref)))
    assert jnp.allclose(out, ref, rtol=2e-3, atol=2e-3), err

    print("KERNEL_OK")
</pallas_src>

<mosaic_0001>
module attributes {stable_mosaic.version = 11 : i64} {
  func.func @_fused_conv_kernel(%arg0: i32, %arg1: memref<10x10x16xbf16, #tpu.memory_space<vmem>>, %arg2: memref<2x2x16x128xbf16, #tpu.memory_space<vmem>>, %arg3: memref<1x128xf32, #tpu.memory_space<vmem>>, %arg4: memref<9x9x128xbf16, #tpu.memory_space<vmem>>) attributes {dimension_semantics = [#tpu.dimension_semantics<parallel>], iteration_bounds = array<i64: 2>, scalar_prefetch = 0 : i64, scratch_operands = 0 : i64, tpu.core_type = #tpu.core_type<tc>, window_params = [{transform_indices = @transform_0, window_bounds = array<i64: 10, 10, 16>}, {pipeline_mode = #tpu.pipeline_mode<synchronous>, transform_indices = @transform_1, window_bounds = array<i64: 2, 2, 16, 128>}, {pipeline_mode = #tpu.pipeline_mode<synchronous>, transform_indices = @transform_2, window_bounds = array<i64: 1, 128>}, {transform_indices = @transform_3, window_bounds = array<i64: 9, 9, 128>}]} {
    %c0 = arith.constant 0 : index
    %c0_0 = arith.constant 0 : index
    %0 = vector.load %arg3[%c0, %c0_0] : memref<1x128xf32, #tpu.memory_space<vmem>>, vector<1x128xf32>
    %c0_1 = arith.constant 0 : index
    %c0_2 = arith.constant 0 : index
    %c0_3 = arith.constant 0 : index
    %c0_4 = arith.constant 0 : index
    %1 = vector.load %arg2[%c0_1, %c0_2, %c0_3, %c0_4] : memref<2x2x16x128xbf16, #tpu.memory_space<vmem>>, vector<1x1x16x128xbf16>
    %2 = vector.shape_cast %1 : vector<1x1x16x128xbf16> to vector<16x128xbf16>
    %c0_5 = arith.constant 0 : index
    %c1 = arith.constant 1 : index
    %c0_6 = arith.constant 0 : index
    %c0_7 = arith.constant 0 : index
    %3 = vector.load %arg2[%c0_5, %c1, %c0_6, %c0_7] : memref<2x2x16x128xbf16, #tpu.memory_space<vmem>>, vector<1x1x16x128xbf16>
    %4 = vector.shape_cast %3 : vector<1x1x16x128xbf16> to vector<16x128xbf16>
    %c1_8 = arith.constant 1 : index
    %c0_9 = arith.constant 0 : index
    %c0_10 = arith.constant 0 : index
    %c0_11 = arith.constant 0 : index
    %5 = vector.load %arg2[%c1_8, %c0_9, %c0_10, %c0_11] : memref<2x2x16x128xbf16, #tpu.memory_space<vmem>>, vector<1x1x16x128xbf16>
    %6 = vector.shape_cast %5 : vector<1x1x16x128xbf16> to vector<16x128xbf16>
    %c1_12 = arith.constant 1 : index
    %c1_13 = arith.constant 1 : index
    %c0_14 = arith.constant 0 : index
    %c0_15 = arith.constant 0 : index
    %7 = vector.load %arg2[%c1_12, %c1_13, %c0_14, %c0_15] : memref<2x2x16x128xbf16, #tpu.memory_space<vmem>>, vector<1x1x16x128xbf16>
    %8 = vector.shape_cast %7 : vector<1x1x16x128xbf16> to vector<16x128xbf16>
    %c0_i32 = arith.constant 0 : i32
    %c9_i32 = arith.constant 9 : i32
    %9 = arith.addi %c0_i32, %c9_i32 : i32
    %c1_i32 = arith.constant 1 : i32
    scf.for %arg5 = %c0_i32 to %9 step %c1_i32  : i32 {
      %c1_i32_17 = arith.constant 1 : i32
      %10 = arith.muli %arg5, %c1_i32_17 : i32
      %c0_i32_18 = arith.constant 0 : i32
      %11 = arith.addi %c0_i32_18, %10 : i32
      %cst = arith.constant 0.000000e+00 : f32
      %12 = vector.broadcast %cst : f32 to vector<9x128xf32>
      %c0_i32_19 = arith.constant 0 : i32
      %13 = arith.addi %11, %c0_i32_19 : i32
      %14 = arith.index_cast %13 : i32 to index
      %c0_20 = arith.constant 0 : index
      %c0_21 = arith.constant 0 : index
      %15 = vector.load %arg1[%14, %c0_20, %c0_21] : memref<10x10x16xbf16, #tpu.memory_space<vmem>>, vector<1x10x16xbf16>
      %16 = vector.shape_cast %15 : vector<1x10x16xbf16> to vector<10x16xbf16>
      %17 = vector.extract_strided_slice %16 {offsets = [0, 0], sizes = [9, 16], strides = [1, 1]} : vector<10x16xbf16> to vector<9x16xbf16>
      %cst_22 = arith.constant dense<0.000000e+00> : vector<9x128xf32>
      %18 = tpu.matmul %17, %2, %cst_22 {dimension_numbers = #tpu.dot_dimension_numbers<[1], [0], [0], [1], [0, 0, 1, 1], [], []>} : vector<9x16xbf16>, vector<16x128xbf16>, vector<9x128xf32> -> vector<9x128xf32>
      %19 = arith.addf %12, %18 : vector<9x128xf32>
      %20 = vector.extract_strided_slice %16 {offsets = [1, 0], sizes = [9, 16], strides = [1, 1]} : vector<10x16xbf16> to vector<9x16xbf16>
      %cst_23 = arith.constant dense<0.000000e+00> : vector<9x128xf32>
      %21 = tpu.matmul %20, %4, %cst_23 {dimension_numbers = #tpu.dot_dimension_numbers<[1], [0], [0], [1], [0, 0, 1, 1], [], []>} : vector<9x16xbf16>, vector<16x128xbf16>, vector<9x128xf32> -> vector<9x128xf32>
      %22 = arith.addf %19, %21 : vector<9x128xf32>
      %c1_i32_24 = arith.constant 1 : i32
      %23 = arith.addi %11, %c1_i32_24 : i32
      %24 = arith.index_cast %23 : i32 to index
      %c0_25 = arith.constant 0 : index
      %c0_26 = arith.constant 0 : index
      %25 = vector.load %arg1[%24, %c0_25, %c0_26] : memref<10x10x16xbf16, #tpu.memory_space<vmem>>, vector<1x10x16xbf16>
      %26 = vector.shape_cast %25 : vector<1x10x16xbf16> to vector<10x16xbf16>
      %27 = vector.extract_strided_slice %26 {offsets = [0, 0], sizes = [9, 16], strides = [1, 1]} : vector<10x16xbf16> to vector<9x16xbf16>
      %cst_27 = arith.constant dense<0.000000e+00> : vector<9x128xf32>
      %28 = tpu.matmul %27, %6, %cst_27 {dimension_numbers = #tpu.dot_dimension_numbers<[1], [0], [0], [1], [0, 0, 1, 1], [], []>} : vector<9x16xbf16>, vector<16x128xbf16>, vector<9x128xf32> -> vector<9x128xf32>
      %29 = arith.addf %22, %28 : vector<9x128xf32>
      %30 = vector.extract_strided_slice %26 {offsets = [1, 0], sizes = [9, 16], strides = [1, 1]} : vector<10x16xbf16> to vector<9x16xbf16>
      %cst_28 = arith.constant dense<0.000000e+00> : vector<9x128xf32>
      %31 = tpu.matmul %30, %8, %cst_28 {dimension_numbers = #tpu.dot_dimension_numbers<[1], [0], [0], [1], [0, 0, 1, 1], [], []>} : vector<9x16xbf16>, vector<16x128xbf16>, vector<9x128xf32> -> vector<9x128xf32>
      %32 = arith.addf %29, %31 : vector<9x128xf32>
      %33 = vector.broadcast %0 : vector<1x128xf32> to vector<9x128xf32>
      %34 = arith.addf %32, %33 : vector<9x128xf32>
      %cst_29 = arith.constant 0.000000e+00 : f32
      %35 = vector.broadcast %cst_29 : f32 to vector<9x128xf32>
      %36 = arith.maximumf %34, %35 : vector<9x128xf32>
      %37 = arith.truncf %36 : vector<9x128xf32> to vector<9x128xbf16>
      %38 = arith.index_cast %11 : i32 to index
      %c0_30 = arith.constant 0 : index
      %c0_31 = arith.constant 0 : index
      %39 = vector.load %arg4[%38, %c0_30, %c0_31] : memref<9x9x128xbf16, #tpu.memory_space<vmem>>, vector<1x9x128xbf16>
      %40 = vector.shape_cast %39 : vector<1x9x128xbf16> to vector<9x128xbf16>
      %41 = vector.shape_cast %37 : vector<9x128xbf16> to vector<1x9x128xbf16>
      tpu.vector_store %arg4[%38, %c0_30, %c0_31], %41 {strides = array<i32>} : memref<9x9x128xbf16, #tpu.memory_space<vmem>>, vector<1x9x128xbf16>,
    }
    %c9_i32_16 = arith.constant 9 : i32
    return
  }
  func.func @transform_0(%arg0: i32) -> (i32, i32, i32) {
    %c0_i32 = arith.constant 0 : i32
    %c0_i32_0 = arith.constant 0 : i32
    %c0_i32_1 = arith.constant 0 : i32
    return %arg0, %c0_i32, %c0_i32_0 : i32, i32, i32
  }
  func.func @transform_1(%arg0: i32) -> (i32, i32, i32, i32) {
    %c0_i32 = arith.constant 0 : i32
    %c0_i32_0 = arith.constant 0 : i32
    %c0_i32_1 = arith.constant 0 : i32
    %c0_i32_2 = arith.constant 0 : i32
    %c0_i32_3 = arith.constant 0 : i32
    return %c0_i32, %c0_i32_0, %c0_i32_1, %c0_i32_2 : i32, i32, i32, i32
  }
  func.func @transform_2(%arg0: i32) -> (i32, i32) {
    %c0_i32 = arith.constant 0 : i32
    %c0_i32_0 = arith.constant 0 : i32
    %c0_i32_1 = arith.constant 0 : i32
    return %c0_i32, %c0_i32_0 : i32, i32
  }
  func.func @transform_3(%arg0: i32) -> (i32, i32, i32) {
    %c0_i32 = arith.constant 0 : i32
    %c0_i32_0 = arith.constant 0 : i32
    %c0_i32_1 = arith.constant 0 : i32
    return %arg0, %c0_i32, %c0_i32_0 : i32, i32, i32
  }
}

module attributes {stable_mosaic.version = 11 : i64} {
  func.func @_fused_conv_kernel(%arg0: i32, %arg1: memref<18x18x32xbf16, #tpu.memory_space<vmem>>, %arg2: memref<2x2x32x128xbf16, #tpu.memory_space<vmem>>, %arg3: memref<1x128xf32, #tpu.memory_space<vmem>>, %arg4: memref<17x17x128xbf16, #tpu.memory_space<vmem>>) attributes {dimension_semantics = [#tpu.dimension_semantics<parallel>], iteration_bounds = array<i64: 2>, scalar_prefetch = 0 : i64, scratch_operands = 0 : i64, tpu.core_type = #tpu.core_type<tc>, window_params = [{transform_indices = @transform_0, window_bounds = array<i64: 18, 18, 32>}, {pipeline_mode = #tpu.pipeline_mode<synchronous>, transform_indices = @transform_1, window_bounds = array<i64: 2, 2, 32, 128>}, {pipeline_mode = #tpu.pipeline_mode<synchronous>, transform_indices = @transform_2, window_bounds = array<i64: 1, 128>}, {transform_indices = @transform_3, window_bounds = array<i64: 17, 17, 128>}]} {
    %c0 = arith.constant 0 : index
    %c0_0 = arith.constant 0 : index
    %0 = vector.load %arg3[%c0, %c0_0] : memref<1x128xf32, #tpu.memory_space<vmem>>, vector<1x128xf32>
    %c0_1 = arith.constant 0 : index
    %c0_2 = arith.constant 0 : index
    %c0_3 = arith.constant 0 : index
    %c0_4 = arith.constant 0 : index
    %1 = vector.load %arg2[%c0_1, %c0_2, %c0_3, %c0_4] : memref<2x2x32x128xbf16, #tpu.memory_space<vmem>>, vector<1x1x32x128xbf16>
    %2 = vector.shape_cast %1 : vector<1x1x32x128xbf16> to vector<32x128xbf16>
    %c0_5 = arith.constant 0 : index
    %c1 = arith.constant 1 : index
    %c0_6 = arith.constant 0 : index
    %c0_7 = arith.constant 0 : index
    %3 = vector.load %arg2[%c0_5, %c1, %c0_6, %c0_7] : memref<2x2x32x128xbf16, #tpu.memory_space<vmem>>, vector<1x1x32x128xbf16>
    %4 = vector.shape_cast %3 : vector<1x1x32x128xbf16> to vector<32x128xbf16>
    %c1_8 = arith.constant 1 : index
    %c0_9 = arith.constant 0 : index
    %c0_10 = arith.constant 0 : index
    %c0_11 = arith.constant 0 : index
    %5 = vector.load %arg2[%c1_8, %c0_9, %c0_10, %c0_11] : memref<2x2x32x128xbf16, #tpu.memory_space<vmem>>, vector<1x1x32x128xbf16>
    %6 = vector.shape_cast %5 : vector<1x1x32x128xbf16> to vector<32x128xbf16>
    %c1_12 = arith.constant 1 : index
    %c1_13 = arith.constant 1 : index
    %c0_14 = arith.constant 0 : index
    %c0_15 = arith.constant 0 : index
    %7 = vector.load %arg2[%c1_12, %c1_13, %c0_14, %c0_15] : memref<2x2x32x128xbf16, #tpu.memory_space<vmem>>, vector<1x1x32x128xbf16>
    %8 = vector.shape_cast %7 : vector<1x1x32x128xbf16> to vector<32x128xbf16>
    %c0_i32 = arith.constant 0 : i32
    %c17_i32 = arith.constant 17 : i32
    %9 = arith.addi %c0_i32, %c17_i32 : i32
    %c1_i32 = arith.constant 1 : i32
    scf.for %arg5 = %c0_i32 to %9 step %c1_i32  : i32 {
      %c1_i32_17 = arith.constant 1 : i32
      %10 = arith.muli %arg5, %c1_i32_17 : i32
      %c0_i32_18 = arith.constant 0 : i32
      %11 = arith.addi %c0_i32_18, %10 : i32
      %cst = arith.constant 0.000000e+00 : f32
      %12 = vector.broadcast %cst : f32 to vector<17x128xf32>
      %c0_i32_19 = arith.constant 0 : i32
      %13 = arith.addi %11, %c0_i32_19 : i32
      %14 = arith.index_cast %13 : i32 to index
      %c0_20 = arith.constant 0 : index
      %c0_21 = arith.constant 0 : index
      %15 = vector.load %arg1[%14, %c0_20, %c0_21] : memref<18x18x32xbf16, #tpu.memory_space<vmem>>, vector<1x18x32xbf16>
      %16 = vector.shape_cast %15 : vector<1x18x32xbf16> to vector<18x32xbf16>
      %17 = vector.extract_strided_slice %16 {offsets = [0, 0], sizes = [17, 32], strides = [1, 1]} : vector<18x32xbf16> to vector<17x32xbf16>
      %cst_22 = arith.constant dense<0.000000e+00> : vector<17x128xf32>
      %18 = tpu.matmul %17, %2, %cst_22 {dimension_numbers = #tpu.dot_dimension_numbers<[1], [0], [0], [1], [0, 0, 1, 1], [], []>} : vector<17x32xbf16>, vector<32x128xbf16>, vector<17x128xf32> -> vector<17x128xf32>
      %19 = arith.addf %12, %18 : vector<17x128xf32>
      %20 = vector.extract_strided_slice %16 {offsets = [1, 0], sizes = [17, 32], strides = [1, 1]} : vector<18x32xbf16> to vector<17x32xbf16>
      %cst_23 = arith.constant dense<0.000000e+00> : vector<17x128xf32>
      %21 = tpu.matmul %20, %4, %cst_23 {dimension_numbers = #tpu.dot_dimension_numbers<[1], [0], [0], [1], [0, 0, 1, 1], [], []>} : vector<17x32xbf16>, vector<32x128xbf16>, vector<17x128xf32> -> vector<17x128xf32>
      %22 = arith.addf %19, %21 : vector<17x128xf32>
      %c1_i32_24 = arith.constant 1 : i32
      %23 = arith.addi %11, %c1_i32_24 : i32
      %24 = arith.index_cast %23 : i32 to index
      %c0_25 = arith.constant 0 : index
      %c0_26 = arith.constant 0 : index
      %25 = vector.load %arg1[%24, %c0_25, %c0_26] : memref<18x18x32xbf16, #tpu.memory_space<vmem>>, vector<1x18x32xbf16>
      %26 = vector.shape_cast %25 : vector<1x18x32xbf16> to vector<18x32xbf16>
      %27 = vector.extract_strided_slice %26 {offsets = [0, 0], sizes = [17, 32], strides = [1, 1]} : vector<18x32xbf16> to vector<17x32xbf16>
      %cst_27 = arith.constant dense<0.000000e+00> : vector<17x128xf32>
      %28 = tpu.matmul %27, %6, %cst_27 {dimension_numbers = #tpu.dot_dimension_numbers<[1], [0], [0], [1], [0, 0, 1, 1], [], []>} : vector<17x32xbf16>, vector<32x128xbf16>, vector<17x128xf32> -> vector<17x128xf32>
      %29 = arith.addf %22, %28 : vector<17x128xf32>
      %30 = vector.extract_strided_slice %26 {offsets = [1, 0], sizes = [17, 32], strides = [1, 1]} : vector<18x32xbf16> to vector<17x32xbf16>
      %cst_28 = arith.constant dense<0.000000e+00> : vector<17x128xf32>
      %31 = tpu.matmul %30, %8, %cst_28 {dimension_numbers = #tpu.dot_dimension_numbers<[1], [0], [0], [1], [0, 0, 1, 1], [], []>} : vector<17x32xbf16>, vector<32x128xbf16>, vector<17x128xf32> -> vector<17x128xf32>
      %32 = arith.addf %29, %31 : vector<17x128xf32>
      %33 = vector.broadcast %0 : vector<1x128xf32> to vector<17x128xf32>
      %34 = arith.addf %32, %33 : vector<17x128xf32>
      %cst_29 = arith.constant 0.000000e+00 : f32
      %35 = vector.broadcast %cst_29 : f32 to vector<17x128xf32>
      %36 = arith.maximumf %34, %35 : vector<17x128xf32>
      %37 = arith.truncf %36 : vector<17x128xf32> to vector<17x128xbf16>
      %38 = arith.index_cast %11 : i32 to index
      %c0_30 = arith.constant 0 : index
      %c0_31 = arith.constant 0 : index
      %39 = vector.load %arg4[%38, %c0_30, %c0_31] : memref<17x17x128xbf16, #tpu.memory_space<vmem>>, vector<1x17x128xbf16>
      %40 = vector.shape_cast %39 : vector<1x17x128xbf16> to vector<17x128xbf16>
      %41 = vector.shape_cast %37 : vector<17x128xbf16> to vector<1x17x128xbf16>
      tpu.vector_store %arg4[%38, %c0_30, %c0_31], %41 {strides = array<i32>} : memref<17x17x128xbf16, #tpu.memory_space<vmem>>, vector<1x17x128xbf16>,
    }
    %c17_i32_16 = arith.constant 17 : i32
    return
  }
  func.func @transform_0(%arg0: i32) -> (i32, i32, i32) {
    %c0_i32 = arith.constant 0 : i32
    %c0_i32_0 = arith.constant 0 : i32
    %c0_i32_1 = arith.constant 0 : i32
    return %arg0, %c0_i32, %c0_i32_0 : i32, i32, i32
  }
  func.func @transform_1(%arg0: i32) -> (i32, i32, i32, i32) {
    %c0_i32 = arith.constant 0 : i32
    %c0_i32_0 = arith.constant 0 : i32
    %c0_i32_1 = arith.constant 0 : i32
    %c0_i32_2 = arith.constant 0 : i32
    %c0_i32_3 = arith.constant 0 : i32
    return %c0_i32, %c0_i32_0, %c0_i32_1, %c0_i32_2 : i32, i32, i32, i32
  }
  func.func @transform_2(%arg0: i32) -> (i32, i32) {
    %c0_i32 = arith.constant 0 : i32
    %c0_i32_0 = arith.constant 0 : i32
    %c0_i32_1 = arith.constant 0 : i32
    return %c0_i32, %c0_i32_0 : i32, i32
  }
  func.func @transform_3(%arg0: i32) -> (i32, i32, i32) {
    %c0_i32 = arith.constant 0 : i32
    %c0_i32_0 = arith.constant 0 : i32
    %c0_i32_1 = arith.constant 0 : i32
    return %arg0, %c0_i32, %c0_i32_0 : i32, i32, i32
  }
}

module attributes {stable_mosaic.version = 11 : i64} {
  func.func @_fused_conv_kernel(%arg0: i32, %arg1: memref<34x34x32xbf16, #tpu.memory_space<vmem>>, %arg2: memref<3x3x32x3xbf16, #tpu.memory_space<vmem>>, %arg3: memref<1x3xf32, #tpu.memory_space<vmem>>, %arg4: memref<32x32x3xf32, #tpu.memory_space<vmem>>) attributes {dimension_semantics = [#tpu.dimension_semantics<parallel>], iteration_bounds = array<i64: 2>, scalar_prefetch = 0 : i64, scratch_operands = 0 : i64, tpu.core_type = #tpu.core_type<tc>, window_params = [{transform_indices = @transform_0, window_bounds = array<i64: 34, 34, 32>}, {pipeline_mode = #tpu.pipeline_mode<synchronous>, transform_indices = @transform_1, window_bounds = array<i64: 3, 3, 32, 3>}, {pipeline_mode = #tpu.pipeline_mode<synchronous>, transform_indices = @transform_2, window_bounds = array<i64: 1, 3>}, {transform_indices = @transform_3, window_bounds = array<i64: 32, 32, 3>}]} {
    %c0 = arith.constant 0 : index
    %c0_0 = arith.constant 0 : index
    %0 = vector.load %arg3[%c0, %c0_0] : memref<1x3xf32, #tpu.memory_space<vmem>>, vector<1x3xf32>
    %c0_1 = arith.constant 0 : index
    %c0_2 = arith.constant 0 : index
    %c0_3 = arith.constant 0 : index
    %c0_4 = arith.constant 0 : index
    %1 = vector.load %arg2[%c0_1, %c0_2, %c0_3, %c0_4] : memref<3x3x32x3xbf16, #tpu.memory_space<vmem>>, vector<1x1x32x3xbf16>
    %2 = vector.shape_cast %1 : vector<1x1x32x3xbf16> to vector<32x3xbf16>
    %c0_5 = arith.constant 0 : index
    %c1 = arith.constant 1 : index
    %c0_6 = arith.constant 0 : index
    %c0_7 = arith.constant 0 : index
    %3 = vector.load %arg2[%c0_5, %c1, %c0_6, %c0_7] : memref<3x3x32x3xbf16, #tpu.memory_space<vmem>>, vector<1x1x32x3xbf16>
    %4 = vector.shape_cast %3 : vector<1x1x32x3xbf16> to vector<32x3xbf16>
    %c0_8 = arith.constant 0 : index
    %c2 = arith.constant 2 : index
    %c0_9 = arith.constant 0 : index
    %c0_10 = arith.constant 0 : index
    %5 = vector.load %arg2[%c0_8, %c2, %c0_9, %c0_10] : memref<3x3x32x3xbf16, #tpu.memory_space<vmem>>, vector<1x1x32x3xbf16>
    %6 = vector.shape_cast %5 : vector<1x1x32x3xbf16> to vector<32x3xbf16>
    %c1_11 = arith.constant 1 : index
    %c0_12 = arith.constant 0 : index
    %c0_13 = arith.constant 0 : index
    %c0_14 = arith.constant 0 : index
    %7 = vector.load %arg2[%c1_11, %c0_12, %c0_13, %c0_14] : memref<3x3x32x3xbf16, #tpu.memory_space<vmem>>, vector<1x1x32x3xbf16>
    %8 = vector.shape_cast %7 : vector<1x1x32x3xbf16> to vector<32x3xbf16>
    %c1_15 = arith.constant 1 : index
    %c1_16 = arith.constant 1 : index
    %c0_17 = arith.constant 0 : index
    %c0_18 = arith.constant 0 : index
    %9 = vector.load %arg2[%c1_15, %c1_16, %c0_17, %c0_18] : memref<3x3x32x3xbf16, #tpu.memory_space<vmem>>, vector<1x1x32x3xbf16>
    %10 = vector.shape_cast %9 : vector<1x1x32x3xbf16> to vector<32x3xbf16>
    %c1_19 = arith.constant 1 : index
    %c2_20 = arith.constant 2 : index
    %c0_21 = arith.constant 0 : index
    %c0_22 = arith.constant 0 : index
    %11 = vector.load %arg2[%c1_19, %c2_20, %c0_21, %c0_22] : memref<3x3x32x3xbf16, #tpu.memory_space<vmem>>, vector<1x1x32x3xbf16>
    %12 = vector.shape_cast %11 : vector<1x1x32x3xbf16> to vector<32x3xbf16>
    %c2_23 = arith.constant 2 : index
    %c0_24 = arith.constant 0 : index
    %c0_25 = arith.constant 0 : index
    %c0_26 = arith.constant 0 : index
    %13 = vector.load %arg2[%c2_23, %c0_24, %c0_25, %c0_26] : memref<3x3x32x3xbf16, #tpu.memory_space<vmem>>, vector<1x1x32x3xbf16>
    %14 = vector.shape_cast %13 : vector<1x1x32x3xbf16> to vector<32x3xbf16>
    %c2_27 = arith.constant 2 : index
    %c1_28 = arith.constant 1 : index
    %c0_29 = arith.constant 0 : index
    %c0_30 = arith.constant 0 : index
    %15 = vector.load %arg2[%c2_27, %c1_28, %c0_29, %c0_30] : memref<3x3x32x3xbf16, #tpu.memory_space<vmem>>, vector<1x1x32x3xbf16>
    %16 = vector.shape_cast %15 : vector<1x1x32x3xbf16> to vector<32x3xbf16>
    %c2_31 = arith.constant 2 : index
    %c2_32 = arith.constant 2 : index
    %c0_33 = arith.constant 0 : index
    %c0_34 = arith.constant 0 : index
    %17 = vector.load %arg2[%c2_31, %c2_32, %c0_33, %c0_34] : memref<3x3x32x3xbf16, #tpu.memory_space<vmem>>, vector<1x1x32x3xbf16>
    %18 = vector.shape_cast %17 : vector<1x1x32x3xbf16> to vector<32x3xbf16>
    %c0_i32 = arith.constant 0 : i32
    %c32_i32 = arith.constant 32 : i32
    %19 = arith.addi %c0_i32, %c32_i32 : i32
    %c1_i32 = arith.constant 1 : i32
    scf.for %arg5 = %c0_i32 to %19 step %c1_i32  : i32 {
      %c1_i32_36 = arith.constant 1 : i32
      %20 = arith.muli %arg5, %c1_i32_36 : i32
      %c0_i32_37 = arith.constant 0 : i32
      %21 = arith.addi %c0_i32_37, %20 : i32
      %cst = arith.constant 0.000000e+00 : f32
      %22 = vector.broadcast %cst : f32 to vector<32x3xf32>
      %c0_i32_38 = arith.constant 0 : i32
      %23 = arith.addi %21, %c0_i32_38 : i32
      %24 = arith.index_cast %23 : i32 to index
      %c0_39 = arith.constant 0 : index
      %c0_40 = arith.constant 0 : index
      %25 = vector.load %arg1[%24, %c0_39, %c0_40] : memref<34x34x32xbf16, #tpu.memory_space<vmem>>, vector<1x34x32xbf16>
      %26 = vector.shape_cast %25 : vector<1x34x32xbf16> to vector<34x32xbf16>
      %27 = vector.extract_strided_slice %26 {offsets = [0, 0], sizes = [32, 32], strides = [1, 1]} : vector<34x32xbf16> to vector<32x32xbf16>
      %cst_41 = arith.constant dense<0.000000e+00> : vector<32x3xf32>
      %28 = tpu.matmul %27, %2, %cst_41 {dimension_numbers = #tpu.dot_dimension_numbers<[1], [0], [0], [1], [0, 0, 1, 1], [], []>} : vector<32x32xbf16>, vector<32x3xbf16>, vector<32x3xf32> -> vector<32x3xf32>
      %29 = arith.addf %22, %28 : vector<32x3xf32>
      %30 = vector.extract_strided_slice %26 {offsets = [1, 0], sizes = [32, 32], strides = [1, 1]} : vector<34x32xbf16> to vector<32x32xbf16>
      %cst_42 = arith.constant dense<0.000000e+00> : vector<32x3xf32>
      %31 = tpu.matmul %30, %4, %cst_42 {dimension_numbers = #tpu.dot_dimension_numbers<[1], [0], [0], [1], [0, 0, 1, 1], [], []>} : vector<32x32xbf16>, vector<32x3xbf16>, vector<32x3xf32> -> vector<32x3xf32>
      %32 = arith.addf %29, %31 : vector<32x3xf32>
      %33 = vector.extract_strided_slice %26 {offsets = [2, 0], sizes = [32, 32], strides = [1, 1]} : vector<34x32xbf16> to vector<32x32xbf16>
      %cst_43 = arith.constant dense<0.000000e+00> : vector<32x3xf32>
      %34 = tpu.matmul %33, %6, %cst_43 {dimension_numbers = #tpu.dot_dimension_numbers<[1], [0], [0], [1], [0, 0, 1, 1], [], []>} : vector<32x32xbf16>, vector<32x3xbf16>, vector<32x3xf32> -> vector<32x3xf32>
      %35 = arith.addf %32, %34 : vector<32x3xf32>
      %c1_i32_44 = arith.constant 1 : i32
      %36 = arith.addi %21, %c1_i32_44 : i32
      %37 = arith.index_cast %36 : i32 to index
      %c0_45 = arith.constant 0 : index
      %c0_46 = arith.constant 0 : index
      %38 = vector.load %arg1[%37, %c0_45, %c0_46] : memref<34x34x32xbf16, #tpu.memory_space<vmem>>, vector<1x34x32xbf16>
      %39 = vector.shape_cast %38 : vector<1x34x32xbf16> to vector<34x32xbf16>
      %40 = vector.extract_strided_slice %39 {offsets = [0, 0], sizes = [32, 32], strides = [1, 1]} : vector<34x32xbf16> to vector<32x32xbf16>
      %cst_47 = arith.constant dense<0.000000e+00> : vector<32x3xf32>
      %41 = tpu.matmul %40, %8, %cst_47 {dimension_numbers = #tpu.dot_dimension_numbers<[1], [0], [0], [1], [0, 0, 1, 1], [], []>} : vector<32x32xbf16>, vector<32x3xbf16>, vector<32x3xf32> -> vector<32x3xf32>
      %42 = arith.addf %35, %41 : vector<32x3xf32>
      %43 = vector.extract_strided_slice %39 {offsets = [1, 0], sizes = [32, 32], strides = [1, 1]} : vector<34x32xbf16> to vector<32x32xbf16>
      %cst_48 = arith.constant dense<0.000000e+00> : vector<32x3xf32>
      %44 = tpu.matmul %43, %10, %cst_48 {dimension_numbers = #tpu.dot_dimension_numbers<[1], [0], [0], [1], [0, 0, 1, 1], [], []>} : vector<32x32xbf16>, vector<32x3xbf16>, vector<32x3xf32> -> vector<32x3xf32>
      %45 = arith.addf %42, %44 : vector<32x3xf32>
      %46 = vector.extract_strided_slice %39 {offsets = [2, 0], sizes = [32, 32], strides = [1, 1]} : vector<34x32xbf16> to vector<32x32xbf16>
      %cst_49 = arith.constant dense<0.000000e+00> : vector<32x3xf32>
      %47 = tpu.matmul %46, %12, %cst_49 {dimension_numbers = #tpu.dot_dimension_numbers<[1], [0], [0], [1], [0, 0, 1, 1], [], []>} : vector<32x32xbf16>, vector<32x3xbf16>, vector<32x3xf32> -> vector<32x3xf32>
      %48 = arith.addf %45, %47 : vector<32x3xf32>
      %c2_i32 = arith.constant 2 : i32
      %49 = arith.addi %21, %c2_i32 : i32
      %50 = arith.index_cast %49 : i32 to index
      %c0_50 = arith.constant 0 : index
      %c0_51 = arith.constant 0 : index
      %51 = vector.load %arg1[%50, %c0_50, %c0_51] : memref<34x34x32xbf16, #tpu.memory_space<vmem>>, vector<1x34x32xbf16>
      %52 = vector.shape_cast %51 : vector<1x34x32xbf16> to vector<34x32xbf16>
      %53 = vector.extract_strided_slice %52 {offsets = [0, 0], sizes = [32, 32], strides = [1, 1]} : vector<34x32xbf16> to vector<32x32xbf16>
      %cst_52 = arith.constant dense<0.000000e+00> : vector<32x3xf32>
      %54 = tpu.matmul %53, %14, %cst_52 {dimension_numbers = #tpu.dot_dimension_numbers<[1], [0], [0], [1], [0, 0, 1, 1], [], []>} : vector<32x32xbf16>, vector<32x3xbf16>, vector<32x3xf32> -> vector<32x3xf32>
      %55 = arith.addf %48, %54 : vector<32x3xf32>
      %56 = vector.extract_strided_slice %52 {offsets = [1, 0], sizes = [32, 32], strides = [1, 1]} : vector<34x32xbf16> to vector<32x32xbf16>
      %cst_53 = arith.constant dense<0.000000e+00> : vector<32x3xf32>
      %57 = tpu.matmul %56, %16, %cst_53 {dimension_numbers = #tpu.dot_dimension_numbers<[1], [0], [0], [1], [0, 0, 1, 1], [], []>} : vector<32x32xbf16>, vector<32x3xbf16>, vector<32x3xf32> -> vector<32x3xf32>
      %58 = arith.addf %55, %57 : vector<32x3xf32>
      %59 = vector.extract_strided_slice %52 {offsets = [2, 0], sizes = [32, 32], strides = [1, 1]} : vector<34x32xbf16> to vector<32x32xbf16>
      %cst_54 = arith.constant dense<0.000000e+00> : vector<32x3xf32>
      %60 = tpu.matmul %59, %18, %cst_54 {dimension_numbers = #tpu.dot_dimension_numbers<[1], [0], [0], [1], [0, 0, 1, 1], [], []>} : vector<32x32xbf16>, vector<32x3xbf16>, vector<32x3xf32> -> vector<32x3xf32>
      %61 = arith.addf %58, %60 : vector<32x3xf32>
      %62 = vector.broadcast %0 : vector<1x3xf32> to vector<32x3xf32>
      %63 = arith.addf %61, %62 : vector<32x3xf32>
      %64 = arith.negf %63 : vector<32x3xf32>
      %65 = math.exp %64 : vector<32x3xf32>
      %cst_55 = arith.constant 1.000000e+00 : f32
      %66 = vector.broadcast %cst_55 : f32 to vector<32x3xf32>
      %67 = arith.addf %66, %65 : vector<32x3xf32>
      %68 = arith.divf %66, %67 : vector<32x3xf32>
      %69 = arith.index_cast %21 : i32 to index
      %c0_56 = arith.constant 0 : index
      %c0_57 = arith.constant 0 : index
      %70 = vector.load %arg4[%69, %c0_56, %c0_57] : memref<32x32x3xf32, #tpu.memory_space<vmem>>, vector<1x32x3xf32>
      %71 = vector.shape_cast %70 : vector<1x32x3xf32> to vector<32x3xf32>
      %72 = vector.shape_cast %68 : vector<32x3xf32> to vector<1x32x3xf32>
      tpu.vector_store %arg4[%69, %c0_56, %c0_57], %72 {strides = array<i32>} : memref<32x32x3xf32, #tpu.memory_space<vmem>>, vector<1x32x3xf32>,
    }
    %c32_i32_35 = arith.constant 32 : i32
    return
  }
  func.func @transform_0(%arg0: i32) -> (i32, i32, i32) {
    %c0_i32 = arith.constant 0 : i32
    %c0_i32_0 = arith.constant 0 : i32
    %c0_i32_1 = arith.constant 0 : i32
    return %arg0, %c0_i32, %c0_i32_0 : i32, i32, i32
  }
  func.func @transform_1(%arg0: i32) -> (i32, i32, i32, i32) {
    %c0_i32 = arith.constant 0 : i32
    %c0_i32_0 = arith.constant 0 : i32
    %c0_i32_1 = arith.constant 0 : i32
    %c0_i32_2 = arith.constant 0 : i32
    %c0_i32_3 = arith.constant 0 : i32
    return %c0_i32, %c0_i32_0, %c0_i32_1, %c0_i32_2 : i32, i32, i32, i32
  }
  func.func @transform_2(%arg0: i32) -> (i32, i32) {
    %c0_i32 = arith.constant 0 : i32
    %c0_i32_0 = arith.constant 0 : i32
    %c0_i32_1 = arith.constant 0 : i32
    return %c0_i32, %c0_i32_0 : i32, i32
  }
  func.func @transform_3(%arg0: i32) -> (i32, i32, i32) {
    %c0_i32 = arith.constant 0 : i32
    %c0_i32_0 = arith.constant 0 : i32
    %c0_i32_1 = arith.constant 0 : i32
    return %arg0, %c0_i32, %c0_i32_0 : i32, i32, i32
  }
}

</mosaic_0001>

<llo_original>
// kernel: tile.13
$region0: #{tile.13}
  #allocation0 [shape = 's32[1]{0}', space=sflag, size = 0x4, scoped, tag = 'scoped memory for tile.13']
  %s0 = inlined_call_operand.vmem [shape: f32[32], index: 0, kind: input, shape index: {}]
  %s1 = inlined_call_operand.vmem [shape: f32[4,32], index: 1, kind: output, shape index: {}]
  // Predicated region
  $region2: #{tile.13} parent=0 // pred_check
    _
  $region3: #{tile.13} parent=0 // pred_check_branch
    %3 = sbr.rel (0) target = $region5
  $region4: #{tile.13} parent=0 // pred_region
    _
  $region5: #{tile.13} parent=0 // pred_fallthru
    _
  %v4 = vld [vmem:[%s0] ss:$0 sm:$0xff]
  %5 = vst [vmem:[%s1] sm:$0xf] %v4

// kernel: tile.14
$region0: #{tile.14}
  %s0 = inlined_call_operand.vmem [shape: f32[4,32], index: 0, kind: input, shape index: {}]
  %s1 = inlined_call_operand.vmem [shape: f32[1,128], index: 1, kind: output, shape index: {}]
  $region1: #{tile.14} parent=0
    #allocation0 [shape = 'u8[4096]{0}', space=vmem, size = 0x1000, scoped, tag = 'scoped mem for output reshape']
    #allocation1 [shape = 'u8[4096]{0}', space=vmem, size = 0x1000, scoped, tag = 'scoped mem for input reshape']
    %s3 = ssub.s32 16, 1
    %v4 = vld [vmem:[%s0] sm:%s3]
    %5 = vst [vmem:[#allocation1] sm:%s3] %v4
    %v6 = vld [vmem:[#allocation1] sm:$0x1]
    %vm7 = vcmask 261120
    %8 = vst.msk [vmem:[#allocation0] sm:$0x1] %vm7, %v6
    %s9 = scalar_lea.vmem [#allocation1], 3
    %v10 = vld [vmem:[%s9] sm:$0x1]
    %11 = vrot.lane.b32.xlu0 %v10, 96
    %v12 = vpop.permute.xlu0 %11
    %vm13 = vcmask 1048320
    %14 = vst.msk [vmem:[#allocation0] sm:$0x1] %vm13, %v12
    %s15 = scalar_lea.vmem [#allocation1], 2
    %v16 = vld [vmem:[%s15] sm:$0x1]
    %17 = vrot.lane.b32.xlu0 %v16, 64
    %v18 = vpop.permute.xlu0 %17
    %vm19 = vcmask 785920
    %20 = vst.msk [vmem:[#allocation0] sm:$0x1] %vm19, %v18
    %s21 = scalar_lea.vmem [#allocation1], 1
    %v22 = vld [vmem:[%s21] sm:$0x1]
    %23 = vrot.lane.b32.xlu0 %v22, 32
    %v24 = vpop.permute.xlu0 %23
    %vm25 = vcmask 523520
    %26 = vst.msk [vmem:[#allocation0] sm:$0x1] %vm25, %v24
    %s28 = ssub.s32 2, 1
    %v29 = vld [vmem:[#allocation0] sm:%s28]
    %s31 = ssub.s32 2, 1
    %32 = vst [vmem:[%s1] sm:%s31] %v29

// kernel: decoder_forward.3
$region0: #{decoder_forward.3}
  #allocation0 [shape = 'u32[]', space=smem, size = 0x4, offset = 0x4, fixed_abs, tag = 'smem constant byte address 0x4 - core index']
  #allocation1 [shape = 'u32[72,128]{1,0:T(1,128)}', space=vmem, size = 0x9000, scoped, tag = 'internal scratch']
  %s0 = inlined_call_operand.vmem [shape: bf16[20,10,16], index: 0, kind: input, shape index: {}]
  %s1 = inlined_call_operand.vmem [shape: bf16[2,2,16,128], index: 1, kind: input, shape index: {}]
  %s2 = inlined_call_operand.vmem [shape: f32[1,128], index: 2, kind: input, shape index: {}]
  %s3 = inlined_call_operand.vmem [shape: bf16[18,9,128], index: 3, kind: output, shape index: {}]
  %s4 = sld [smem:[#allocation0]]
  $region52: #{decoder_forward.3} parent=0
    _
  %s6 = ssub.s32 1, %s4
  %s7 = scalar_select 0, %s6, %s4
  loop: start=0, step=1, limit=4
  $region2: #{decoder_forward.3} parent=0 // loop_pre_header
    _
  $region3: #{decoder_forward.3} parent=0 // loop_header
    %s9 = sphi 0, %s13
    %p10 = scmp.ge.s32.totalorder %s9, 4
    %s19 = sphi 0, %s21
    %s22 = sphi 0, %s19
    %s23 = sphi 0, %s22
    %s39 = sphi 0, %s23
    %s43 = sphi 0, %s43
    %s45 = sphi 0, %s43
    %s46 = sphi 0, %s45
    %s60 = sphi 0, %s46
    %s64 = sphi 0, %s64
    %s66 = sphi 0, %s64
    %s67 = sphi 0, %s66
    %s81 = sphi 0, %s67
    %s87 = sphi 0, %s89
    %s90 = sphi 0, %s87
    %s91 = sphi 0, %s90
    %s107 = sphi 0, %s91
  $region4: #{decoder_forward.3} parent=0 // loop_header_branch
    %12 = sbr.rel (%p10) target = $region8
  $region5: #{decoder_forward.3} parent=0 // loop_body
    %s14 = ssub.s32 %s9, 1
    %s15 = ssub.s32 %s9, 2
    %s16 = sadd.s32 %s9, 1
    %s17 = ssub.s32 %s9, %s16
    %p18 = scmp.eq.s32.totalorder %s17, 0
    %s20 = sadd.s32 %s19, 1
    %s21 = scalar_select %p18, %s19, %s20
    %p24 = pneg %p18
    %p25 = scmp.eq.s32.totalorder %s9, 1
    %p26 = por %p24, %p25
    %p27 = scmp.ne.s32.totalorder %s19, %s22
    %p28 = scmp.eq.s32.totalorder %s9, 0
    %p29 = por %p27, %p28
    %p30 = scmp.ne.s32.totalorder %s19, %s22
    %p31 = scmp.eq.s32.totalorder %s14, 1
    %p32 = por %p30, %p31
    %p33 = scmp.ne.s32.totalorder %s22, %s23
    %p34 = scmp.eq.s32.totalorder %s14, 0
    %p35 = por %p33, %p34
    %p36 = scmp.ne.s32.totalorder %s22, %s23
    %p37 = scmp.eq.s32.totalorder %s15, 1
    %p38 = por %p36, %p37
    %p40 = scmp.ne.s32.totalorder %s23, %s39
    %p41 = scmp.eq.s32.totalorder %s15, 0
    %p42 = por %p40, %p41
    %s44 = sadd.s32 %s43, 1
    %p47 = scmp.eq.s32.totalorder %s9, 1
    %p48 = scmp.ne.s32.totalorder %s43, %s45
    %p49 = scmp.eq.s32.totalorder %s9, 0
    %p50 = por %p48, %p49
    %p51 = scmp.ne.s32.totalorder %s43, %s45
    %p52 = scmp.eq.s32.totalorder %s14, 1
    %p53 = por %p51, %p52
    %p54 = scmp.ne.s32.totalorder %s45, %s46
    %p55 = scmp.eq.s32.totalorder %s14, 0
    %p56 = por %p54, %p55
    %p57 = scmp.ne.s32.totalorder %s45, %s46
    %p58 = scmp.eq.s32.totalorder %s15, 1
    %p59 = por %p57, %p58
    %p61 = scmp.ne.s32.totalorder %s46, %s60
    %p62 = scmp.eq.s32.totalorder %s15, 0
    %p63 = por %p61, %p62
    %s65 = sadd.s32 %s64, 1
    %p68 = scmp.eq.s32.totalorder %s9, 1
    %p69 = scmp.ne.s32.totalorder %s64, %s66
    %p70 = scmp.eq.s32.totalorder %s9, 0
    %p71 = por %p69, %p70
    %p72 = scmp.ne.s32.totalorder %s64, %s66
    %p73 = scmp.eq.s32.totalorder %s14, 1
    %p74 = por %p72, %p73
    %p75 = scmp.ne.s32.totalorder %s66, %s67
    %p76 = scmp.eq.s32.totalorder %s14, 0
    %p77 = por %p75, %p76
    %p78 = scmp.ne.s32.totalorder %s66, %s67
    %p79 = scmp.eq.s32.totalorder %s15, 1
    %p80 = por %p78, %p79
    %p82 = scmp.ne.s32.totalorder %s67, %s81
    %p83 = scmp.eq.s32.totalorder %s15, 0
    %p84 = por %p82, %p83
    %s85 = ssub.s32 %s9, %s16
    %p86 = scmp.eq.s32.totalorder %s85, 0
    %s88 = sadd.s32 %s87, 1
    %s89 = scalar_select %p86, %s87, %s88
    %p92 = pneg %p86
    %p93 = scmp.eq.s32.totalorder %s9, 1
    %p94 = por %p92, %p93
    %p95 = scmp.ne.s32.totalorder %s87, %s90
    %p96 = scmp.eq.s32.totalorder %s9, 0
    %p97 = por %p95, %p96
    %p98 = scmp.ne.s32.totalorder %s87, %s90
    %p99 = scmp.eq.s32.totalorder %s14, 1
    %p100 = por %p98, %p99
    %p101 = scmp.ne.s32.totalorder %s90, %s91
    %p102 = scmp.eq.s32.totalorder %s14, 0
    %p103 = por %p101, %p102
    %p104 = scmp.ne.s32.totalorder %s90, %s91
    %p105 = scmp.eq.s32.totalorder %s15, 1
    %p106 = por %p104, %p105
    %p108 = scmp.ne.s32.totalorder %s91, %s107
    %p109 = scmp.eq.s32.totalorder %s15, 0
    %p110 = por %p108, %p109
    %p111 = scmp.le.s32.totalorder 1, %s9
    %p112 = scmp.lt.s32.totalorder %s9, 3
    %p113 = pnand %p111, %p112
    %p114 = pneg %p113
    // Predicated region
    $region9: #{decoder_forward.3} parent=5 // pred_check
      _
    $region10: #{decoder_forward.3} parent=5 // pred_check_branch
      %116 = sbr.rel (%p113) target = $region12
    $region11: #{decoder_forward.3} parent=5 // pred_region
      %s117 = ssub.s32 %s9, 1
      // Predicated region
      $region13: #{decoder_forward.3} parent=11 // pred_check
        %p118 = pneg %p56
      $region14: #{decoder_forward.3} parent=11 // pred_check_branch
        %120 = sbr.rel (%p118) target = $region16
      $region15: #{decoder_forward.3} parent=11 // pred_region
        _
      $region16: #{decoder_forward.3} parent=11 // pred_fallthru
        _
      // Predicated region
      $region17: #{decoder_forward.3} parent=11 // pred_check
        %p121 = pneg %p77
      $region18: #{decoder_forward.3} parent=11 // pred_check_branch
        %123 = sbr.rel (%p121) target = $region20
      $region19: #{decoder_forward.3} parent=11 // pred_region
        _
      $region20: #{decoder_forward.3} parent=11 // pred_fallthru
        _
    $region12: #{decoder_forward.3} parent=5 // pred_fallthru
      _
    %p124 = scmp.lt.s32.totalorder %s9, 2
    // Predicated region
    $region21: #{decoder_forward.3} parent=5 // pred_check
      %p125 = pneg %p124
    $region22: #{decoder_forward.3} parent=5 // pred_check_branch
      %127 = sbr.rel (%p125) target = $region24
    $region23: #{decoder_forward.3} parent=5 // pred_region
      // Predicated region
      $region25: #{decoder_forward.3} parent=23 // pred_check
        %p128 = pneg %p29
      $region26: #{decoder_forward.3} parent=23 // pred_check_branch
        %130 = sbr.rel (%p128) target = $region28
      $region27: #{decoder_forward.3} parent=23 // pred_region
        %s131 = smul.u32 10, %s9
        %p132 = scmp.lt.s32.totalorder %s131, 19
        %s133 = scalar_select %p132, %s131, 19
        %s134 = smul.addr %s133, 2
        %s135 = smul.addr %s134, 4
        %s136 = scalar_lea.vmem %s0, %s135
        %s137 = smul.u32 10, %s9
      $region28: #{decoder_forward.3} parent=23 // pred_fallthru
        _
    $region24: #{decoder_forward.3} parent=5 // pred_fallthru
      _
    %p138 = scmp.le.s32.totalorder 1, %s9
    %p139 = scmp.lt.s32.totalorder %s9, 3
    %p140 = pnand %p138, %p139
    %p141 = pneg %p140
    // Predicated region
    $region29: #{decoder_forward.3} parent=5 // pred_check
      _
    $region30: #{decoder_forward.3} parent=5 // pred_check_branch
      %143 = sbr.rel (%p140) target = $region32
    $region31: #{decoder_forward.3} parent=5 // pred_region
      %s144 = ssub.s32 %s9, 1
      %s145 = smul.u32 10, %s14
      %p146 = scmp.lt.s32.totalorder %s145, 19
      %s147 = scalar_select %p146, %s145, 19
      %s148 = smul.addr %s147, 2
      %s149 = smul.addr %s148, 4
      %s150 = scalar_lea.vmem %s0, %s149
      %p151 = pneg %p35
      %p152 = pneg %p32
      %p153 = pneg %p56
      %p154 = pneg %p53
      %p155 = pneg %p77
      %p156 = pneg %p74
      %p157 = pneg %p103
      %p158 = pneg %p100
      %s159 = smul.u32 9, %s14
      %p160 = scmp.lt.s32.totalorder %s159, 17
      %s161 = scalar_select %p160, %s159, 17
      %s162 = smul.addr %s161, 2
      %s163 = smul.addr %s162, 4
      %s164 = scalar_lea.vmem %s3, %s163
      %s165 = smul.u32 10, %s14
      %p166 = scmp.lt.s32.totalorder %s165, 19
      %s167 = scalar_select %p166, %s165, 19
      %s168 = smul.addr %s167, 2
      %s169 = smul.addr %s168, 4
      %s170 = scalar_lea.vmem %s0, %s169
      %s171 = smul.u32 10, %s14
      %s172 = smul.u32 9, %s14
      %p173 = scmp.lt.s32.totalorder %s172, 17
      %s174 = scalar_select %p173, %s172, 17
      %s175 = smul.addr %s174, 2
      %s176 = smul.addr %s175, 4
      %s177 = scalar_lea.vmem %s3, %s176
      %s178 = smul.u32 9, %s14
      %v180 = vld [vmem:[%s2] sm:$0x1]
      %v181 = vld [vmem:[%s1] sm:$0xf]
      %v182 = vld [vmem:[%s1 + $0x4] sm:$0xf]
      %s183 = scalar_lea.vmem %s1, 8
      %v184 = vld [vmem:[%s183] sm:$0xf]
      %v185 = vld [vmem:[%s183 + $0x4] sm:$0xf]
      %s186 = scalar_lea.vmem %s1, 16
      %v187 = vld [vmem:[%s186] sm:$0xf]
      %v188 = vld [vmem:[%s186 + $0x4] sm:$0xf]
      %s189 = scalar_lea.vmem %s1, 24
      %v190 = vld [vmem:[%s189] sm:$0xf]
      %v191 = vld [vmem:[%s189 + $0x4] sm:$0xf]
      loop: start=0, step=1, limit=9
      $region33: #{decoder_forward.3} parent=31 // loop_pre_header
        _
      $region34: #{decoder_forward.3} parent=31 // loop_header
        %s193 = sphi 0, %s197
        %p194 = scmp.ge.s32.totalorder %s193, 9
      $region35: #{decoder_forward.3} parent=31 // loop_header_branch
        %196 = sbr.rel (%p194) target = $region39
      $region36: #{decoder_forward.3} parent=31 // loop_body
        %s198 = smul.u32 %s193, 2
        %s199 = smul.addr %s198, 4
        %s200 = scalar_lea.vmem %s170, %s199
        %v201 = vld [vmem:[%s200] sm:$0xf]
        %v202 = vld [vmem:[%s200 + $0x4] sm:$0x1]
        %v205 = vunpack.c.l.b16 %v201
        %v206 = vunpack.c.l.b16 %v202
        %v207 = vpack.c.b16 %v206, %v205
        %v209 = vshrl.u32 %v207, 16
        %v211 = vshll.u32 %v207, 16
        %v213 = vrot.slane %v211, 1
        %v214 = vor.u32 %v209, %v213
        %v217 = vunpack.c.l.b16 %v184
        %v218 = vunpack.c.l.b16 %v185
        %v219 = vpack.c.b16 %v218, %v217
        %vm221 = vcmask 130048
        %v223 = vsel %vm221, %v214, 0
        %225 = vmatpush.bf16.msra.mxu0 0
        %226 = vmatpush.bf16.msra.mxu0 0
        %227 = vmatpush.bf16.msra.mxu0 0
        %228 = vmatpush.bf16.msra.mxu0 0
        %229 = vmatpush.bf16.msra.mxu0 0
        %230 = vmatpush.bf16.msra.mxu0 0
        %231 = vmatpush.bf16.msra.mxu0 0
        %232 = vmatpush.bf16.msra.mxu0 %v219
        %233 = vmatmul.bf16.gmra.mxu0 %v223
        %v234 = vpop.f32.mrf.mxu0
        %v235 = vadd.f32 0.0, %v234
        %v236 = vpop.f32.mrf.mxu0
        %v237 = vadd.f32 0.0, %v236
        %238 = vdwg.mxu0
        %v241 = vunpack.c.l.b16 %v181
        %v242 = vunpack.c.l.b16 %v182
        %v243 = vpack.c.b16 %v242, %v241
        %v245 = vsel %vm221, %v207, 0
        %247 = vmatpush.bf16.msra.mxu0 0
        %248 = vmatpush.bf16.msra.mxu0 0
        %249 = vmatpush.bf16.msra.mxu0 0
        %250 = vmatpush.bf16.msra.mxu0 0
        %251 = vmatpush.bf16.msra.mxu0 0
        %252 = vmatpush.bf16.msra.mxu0 0
        %253 = vmatpush.bf16.msra.mxu0 0
        %254 = vmatpush.bf16.msra.mxu0 %v243
        %255 = vmatmul.bf16.gmra.mxu0 %v245
        %v256 = vpop.f32.mrf.mxu0
        %v257 = vadd.f32 %v235, %v256
        %v258 = vpop.f32.mrf.mxu0
        %v259 = vadd.f32 %v237, %v258
        %260 = vdwg.mxu0
        %s261 = sadd.s32 %s193, 1
        %s262 = smul.u32 %s261, 2
        %s263 = smul.addr %s262, 4
        %s264 = scalar_lea.vmem %s170, %s263
        %v265 = vld [vmem:[%s264] sm:$0xf]
        %v266 = vld [vmem:[%s264 + $0x4] sm:$0x1]
        %v269 = vunpack.c.l.b16 %v265
        %v270 = vunpack.c.l.b16 %v266
        %v271 = vpack.c.b16 %v270, %v269
        %v274 = vunpack.c.l.b16 %v187
        %v275 = vunpack.c.l.b16 %v188
        %v276 = vpack.c.b16 %v275, %v274
        %v279 = vsel %vm221, %v271, 0
        %281 = vmatpush.bf16.msra.mxu0 0
        %282 = vmatpush.bf16.msra.mxu0 0
        %283 = vmatpush.bf16.msra.mxu0 0
        %284 = vmatpush.bf16.msra.mxu0 0
        %285 = vmatpush.bf16.msra.mxu0 0
        %286 = vmatpush.bf16.msra.mxu0 0
        %287 = vmatpush.bf16.msra.mxu0 0
        %288 = vmatpush.bf16.msra.mxu0 %v276
        %289 = vmatmul.bf16.gmra.mxu0 %v279
        %v290 = vpop.f32.mrf.mxu0
        %v291 = vadd.f32 0.0, %v290
        %v292 = vpop.f32.mrf.mxu0
        %v293 = vadd.f32 0.0, %v292
        %294 = vdwg.mxu0
        %v295 = vadd.f32 %v257, %v291
        %v296 = vadd.f32 %v259, %v293
        %v297 = vshrl.u32 %v271, 16
        %v299 = vshll.u32 %v271, 16
        %v301 = vrot.slane %v299, 1
        %v302 = vor.u32 %v297, %v301
        %v305 = vunpack.c.l.b16 %v190
        %v306 = vunpack.c.l.b16 %v191
        %v307 = vpack.c.b16 %v306, %v305
        %v310 = vsel %vm221, %v302, 0
        %312 = vmatpush.bf16.msra.mxu0 0
        %313 = vmatpush.bf16.msra.mxu0 0
        %314 = vmatpush.bf16.msra.mxu0 0
        %315 = vmatpush.bf16.msra.mxu0 0
        %316 = vmatpush.bf16.msra.mxu0 0
        %317 = vmatpush.bf16.msra.mxu0 0
        %318 = vmatpush.bf16.msra.mxu0 0
        %319 = vmatpush.bf16.msra.mxu0 %v307
        %320 = vmatmul.bf16.gmra.mxu0 %v310
        %v321 = vpop.f32.mrf.mxu0
        %v322 = vadd.f32 0.0, %v321
        %v323 = vpop.f32.mrf.mxu0
        %v324 = vadd.f32 0.0, %v323
        %325 = vdwg.mxu0
        %v326 = vadd.f32 %v295, %v322
        %v327 = vadd.f32 %v296, %v324
        %v329 = vperm.slane %v180, 0
        %v331 = vadd.f32 %v326, %v329
        %v332 = vadd.f32 %v327, %v329
        %v333 = vmax.f32 %v331, 0.0
        %v334 = vmax.f32 %v332, 0.0
        %v335 = vpack.c.bf16 %v333, %v333
        %v336 = vpack.c.bf16 %v334, %v334
        %s337 = smul.addr %s198, 4
        %s338 = scalar_lea.vmem %s177, %s337
        %339 = vst [vmem:[%s338] sm:$0xf] %v335
        %vm340 = vcmask 1040384
        %vm341 = vsmask.f32 256
        %vm342 = vmand %vm340, %vm341
        %v343 = vld [vmem:[%s338 + $0x4] sm:$0x1]
        %v344 = vsel %vm342, %v336, %v343
        %345 = vst [vmem:[%s338 + $0x4] sm:$0x1] %v344
      $region37: #{decoder_forward.3} parent=31 // loop_footer
        %s197 = sadd.s32 1, %s193
      $region38: #{decoder_forward.3} parent=31 // loop_footer_branch
        %192 = sbr.rel target = $region34
      $region39: #{decoder_forward.3} parent=31 // loop_exit
        _
      %s346 = smul.u32 9, %s14
      %p347 = scmp.lt.s32.totalorder %s346, 17
      %s348 = scalar_select %p347, %s346, 17
      %s349 = smul.addr %s348, 2
      %s350 = smul.addr %s349, 4
      %s351 = scalar_lea.vmem %s3, %s350
      // Predicated region
      $region40: #{decoder_forward.3} parent=31 // pred_check
        %p352 = pneg %p100
      $region41: #{decoder_forward.3} parent=31 // pred_check_branch
        %354 = sbr.rel (%p352) target = $region43
      $region42: #{decoder_forward.3} parent=31 // pred_region
        %s355 = smul.u32 9, %s14
      $region43: #{decoder_forward.3} parent=31 // pred_fallthru
        _
    $region32: #{decoder_forward.3} parent=5 // pred_fallthru
      _
    %p356 = scmp.le.s32.totalorder 2, %s9
    // Predicated region
    $region44: #{decoder_forward.3} parent=5 // pred_check
      %p357 = pneg %p356
    $region45: #{decoder_forward.3} parent=5 // pred_check_branch
      %359 = sbr.rel (%p357) target = $region47
    $region46: #{decoder_forward.3} parent=5 // pred_region
      %s360 = ssub.s32 %s9, 2
      // Predicated region
      $region48: #{decoder_forward.3} parent=46 // pred_check
        %p361 = pneg %p106
      $region49: #{decoder_forward.3} parent=46 // pred_check_branch
        %363 = sbr.rel (%p361) target = $region51
      $region50: #{decoder_forward.3} parent=46 // pred_region
        %s364 = smul.u32 9, %s15
        %p365 = scmp.lt.s32.totalorder %s364, 17
        %s366 = scalar_select %p365, %s364, 17
        %s367 = smul.addr %s366, 2
        %s368 = smul.addr %s367, 4
        %s369 = scalar_lea.vmem %s3, %s368
      $region51: #{decoder_forward.3} parent=46 // pred_fallthru
        _
    $region47: #{decoder_forward.3} parent=5 // pred_fallthru
      _
  $region6: #{decoder_forward.3} parent=0 // loop_footer
    %s13 = sadd.s32 1, %s9
  $region7: #{decoder_forward.3} parent=0 // loop_footer_branch
    %8 = sbr.rel target = $region3
  $region8: #{decoder_forward.3} parent=0 // loop_exit
    _

// kernel: decoder_forward.4
$region0: #{decoder_forward.4}
  #allocation0 [shape = 'u32[]', space=smem, size = 0x4, offset = 0x4, fixed_abs, tag = 'smem constant byte address 0x4 - core index']
  #allocation1 [shape = 'u32[72,128]{1,0:T(1,128)}', space=vmem, size = 0x9000, scoped, tag = 'internal scratch']
  %s0 = inlined_call_operand.vmem [shape: bf16[36,18,32], index: 0, kind: input, shape index: {}]
  %s1 = inlined_call_operand.vmem [shape: bf16[2,2,32,128], index: 1, kind: input, shape index: {}]
  %s2 = inlined_call_operand.vmem [shape: f32[1,128], index: 2, kind: input, shape index: {}]
  %s3 = inlined_call_operand.vmem [shape: bf16[34,17,128], index: 3, kind: output, shape index: {}]
  %s4 = sld [smem:[#allocation0]]
  $region52: #{decoder_forward.4} parent=0
    _
  %s6 = ssub.s32 1, %s4
  %s7 = scalar_select 0, %s6, %s4
  loop: start=0, step=1, limit=4
  $region2: #{decoder_forward.4} parent=0 // loop_pre_header
    _
  $region3: #{decoder_forward.4} parent=0 // loop_header
    %s9 = sphi 0, %s13
    %p10 = scmp.ge.s32.totalorder %s9, 4
    %s19 = sphi 0, %s21
    %s22 = sphi 0, %s19
    %s23 = sphi 0, %s22
    %s39 = sphi 0, %s23
    %s43 = sphi 0, %s43
    %s45 = sphi 0, %s43
    %s46 = sphi 0, %s45
    %s60 = sphi 0, %s46
    %s64 = sphi 0, %s64
    %s66 = sphi 0, %s64
    %s67 = sphi 0, %s66
    %s81 = sphi 0, %s67
    %s87 = sphi 0, %s89
    %s90 = sphi 0, %s87
    %s91 = sphi 0, %s90
    %s107 = sphi 0, %s91
  $region4: #{decoder_forward.4} parent=0 // loop_header_branch
    %12 = sbr.rel (%p10) target = $region8
  $region5: #{decoder_forward.4} parent=0 // loop_body
    %s14 = ssub.s32 %s9, 1
    %s15 = ssub.s32 %s9, 2
    %s16 = sadd.s32 %s9, 1
    %s17 = ssub.s32 %s9, %s16
    %p18 = scmp.eq.s32.totalorder %s17, 0
    %s20 = sadd.s32 %s19, 1
    %s21 = scalar_select %p18, %s19, %s20
    %p24 = pneg %p18
    %p25 = scmp.eq.s32.totalorder %s9, 1
    %p26 = por %p24, %p25
    %p27 = scmp.ne.s32.totalorder %s19, %s22
    %p28 = scmp.eq.s32.totalorder %s9, 0
    %p29 = por %p27, %p28
    %p30 = scmp.ne.s32.totalorder %s19, %s22
    %p31 = scmp.eq.s32.totalorder %s14, 1
    %p32 = por %p30, %p31
    %p33 = scmp.ne.s32.totalorder %s22, %s23
    %p34 = scmp.eq.s32.totalorder %s14, 0
    %p35 = por %p33, %p34
    %p36 = scmp.ne.s32.totalorder %s22, %s23
    %p37 = scmp.eq.s32.totalorder %s15, 1
    %p38 = por %p36, %p37
    %p40 = scmp.ne.s32.totalorder %s23, %s39
    %p41 = scmp.eq.s32.totalorder %s15, 0
    %p42 = por %p40, %p41
    %s44 = sadd.s32 %s43, 1
    %p47 = scmp.eq.s32.totalorder %s9, 1
    %p48 = scmp.ne.s32.totalorder %s43, %s45
    %p49 = scmp.eq.s32.totalorder %s9, 0
    %p50 = por %p48, %p49
    %p51 = scmp.ne.s32.totalorder %s43, %s45
    %p52 = scmp.eq.s32.totalorder %s14, 1
    %p53 = por %p51, %p52
    %p54 = scmp.ne.s32.totalorder %s45, %s46
    %p55 = scmp.eq.s32.totalorder %s14, 0
    %p56 = por %p54, %p55
    %p57 = scmp.ne.s32.totalorder %s45, %s46
    %p58 = scmp.eq.s32.totalorder %s15, 1
    %p59 = por %p57, %p58
    %p61 = scmp.ne.s32.totalorder %s46, %s60
    %p62 = scmp.eq.s32.totalorder %s15, 0
    %p63 = por %p61, %p62
    %s65 = sadd.s32 %s64, 1
    %p68 = scmp.eq.s32.totalorder %s9, 1
    %p69 = scmp.ne.s32.totalorder %s64, %s66
    %p70 = scmp.eq.s32.totalorder %s9, 0
    %p71 = por %p69, %p70
    %p72 = scmp.ne.s32.totalorder %s64, %s66
    %p73 = scmp.eq.s32.totalorder %s14, 1
    %p74 = por %p72, %p73
    %p75 = scmp.ne.s32.totalorder %s66, %s67
    %p76 = scmp.eq.s32.totalorder %s14, 0
    %p77 = por %p75, %p76
    %p78 = scmp.ne.s32.totalorder %s66, %s67
    %p79 = scmp.eq.s32.totalorder %s15, 1
    %p80 = por %p78, %p79
    %p82 = scmp.ne.s32.totalorder %s67, %s81
    %p83 = scmp.eq.s32.totalorder %s15, 0
    %p84 = por %p82, %p83
    %s85 = ssub.s32 %s9, %s16
    %p86 = scmp.eq.s32.totalorder %s85, 0
    %s88 = sadd.s32 %s87, 1
    %s89 = scalar_select %p86, %s87, %s88
    %p92 = pneg %p86
    %p93 = scmp.eq.s32.totalorder %s9, 1
    %p94 = por %p92, %p93
    %p95 = scmp.ne.s32.totalorder %s87, %s90
    %p96 = scmp.eq.s32.totalorder %s9, 0
    %p97 = por %p95, %p96
    %p98 = scmp.ne.s32.totalorder %s87, %s90
    %p99 = scmp.eq.s32.totalorder %s14, 1
    %p100 = por %p98, %p99
    %p101 = scmp.ne.s32.totalorder %s90, %s91
    %p102 = scmp.eq.s32.totalorder %s14, 0
    %p103 = por %p101, %p102
    %p104 = scmp.ne.s32.totalorder %s90, %s91
    %p105 = scmp.eq.s32.totalorder %s15, 1
    %p106 = por %p104, %p105
    %p108 = scmp.ne.s32.totalorder %s91, %s107
    %p109 = scmp.eq.s32.totalorder %s15, 0
    %p110 = por %p108, %p109
    %p111 = scmp.le.s32.totalorder 1, %s9
    %p112 = scmp.lt.s32.totalorder %s9, 3
    %p113 = pnand %p111, %p112
    %p114 = pneg %p113
    // Predicated region
    $region9: #{decoder_forward.4} parent=5 // pred_check
      _
    $region10: #{decoder_forward.4} parent=5 // pred_check_branch
      %116 = sbr.rel (%p113) target = $region12
    $region11: #{decoder_forward.4} parent=5 // pred_region
      %s117 = ssub.s32 %s9, 1
      // Predicated region
      $region13: #{decoder_forward.4} parent=11 // pred_check
        %p118 = pneg %p56
      $region14: #{decoder_forward.4} parent=11 // pred_check_branch
        %120 = sbr.rel (%p118) target = $region16
      $region15: #{decoder_forward.4} parent=11 // pred_region
        _
      $region16: #{decoder_forward.4} parent=11 // pred_fallthru
        _
      // Predicated region
      $region17: #{decoder_forward.4} parent=11 // pred_check
        %p121 = pneg %p77
      $region18: #{decoder_forward.4} parent=11 // pred_check_branch
        %123 = sbr.rel (%p121) target = $region20
      $region19: #{decoder_forward.4} parent=11 // pred_region
        _
      $region20: #{decoder_forward.4} parent=11 // pred_fallthru
        _
    $region12: #{decoder_forward.4} parent=5 // pred_fallthru
      _
    %p124 = scmp.lt.s32.totalorder %s9, 2
    // Predicated region
    $region21: #{decoder_forward.4} parent=5 // pred_check
      %p125 = pneg %p124
    $region22: #{decoder_forward.4} parent=5 // pred_check_branch
      %127 = sbr.rel (%p125) target = $region24
    $region23: #{decoder_forward.4} parent=5 // pred_region
      // Predicated region
      $region25: #{decoder_forward.4} parent=23 // pred_check
        %p128 = pneg %p29
      $region26: #{decoder_forward.4} parent=23 // pred_check_branch
        %130 = sbr.rel (%p128) target = $region28
      $region27: #{decoder_forward.4} parent=23 // pred_region
        %s131 = smul.u32 18, %s9
        %p132 = scmp.lt.s32.totalorder %s131, 35
        %s133 = scalar_select %p132, %s131, 35
        %s134 = smul.addr %s133, 3
        %s135 = smul.addr %s134, 4
        %s136 = scalar_lea.vmem %s0, %s135
        %s137 = smul.u32 18, %s9
      $region28: #{decoder_forward.4} parent=23 // pred_fallthru
        _
    $region24: #{decoder_forward.4} parent=5 // pred_fallthru
      _
    %p138 = scmp.le.s32.totalorder 1, %s9
    %p139 = scmp.lt.s32.totalorder %s9, 3
    %p140 = pnand %p138, %p139
    %p141 = pneg %p140
    // Predicated region
    $region29: #{decoder_forward.4} parent=5 // pred_check
      _
    $region30: #{decoder_forward.4} parent=5 // pred_check_branch
      %143 = sbr.rel (%p140) target = $region32
    $region31: #{decoder_forward.4} parent=5 // pred_region
      %s144 = ssub.s32 %s9, 1
      %s145 = smul.u32 18, %s14
      %p146 = scmp.lt.s32.totalorder %s145, 35
      %s147 = scalar_select %p146, %s145, 35
      %s148 = smul.addr %s147, 3
      %s149 = smul.addr %s148, 4
      %s150 = scalar_lea.vmem %s0, %s149
      %p151 = pneg %p35
      %p152 = pneg %p32
      %p153 = pneg %p56
      %p154 = pneg %p53
      %p155 = pneg %p77
      %p156 = pneg %p74
      %p157 = pneg %p103
      %p158 = pneg %p100
      %s159 = smul.u32 17, %s14
      %p160 = scmp.lt.s32.totalorder %s159, 33
      %s161 = scalar_select %p160, %s159, 33
      %s162 = smul.addr %s161, 3
      %s163 = smul.addr %s162, 4
      %s164 = scalar_lea.vmem %s3, %s163
      %s165 = smul.u32 18, %s14
      %p166 = scmp.lt.s32.totalorder %s165, 35
      %s167 = scalar_select %p166, %s165, 35
      %s168 = smul.addr %s167, 3
      %s169 = smul.addr %s168, 4
      %s170 = scalar_lea.vmem %s0, %s169
      %s171 = smul.u32 18, %s14
      %s172 = smul.u32 17, %s14
      %p173 = scmp.lt.s32.totalorder %s172, 33
      %s174 = scalar_select %p173, %s172, 33
      %s175 = smul.addr %s174, 3
      %s176 = smul.addr %s175, 4
      %s177 = scalar_lea.vmem %s3, %s176
      %s178 = smul.u32 17, %s14
      %v180 = vld [vmem:[%s2] sm:$0x1]
      %v181 = vld [vmem:[%s1] sm:$0xf]
      %v182 = vld [vmem:[%s1 + $0x4] sm:$0xf]
      %v183 = vld [vmem:[%s1 + $0x8] sm:$0xf]
      %v184 = vld [vmem:[%s1 + $0xc] sm:$0xf]
      %s185 = scalar_lea.vmem %s1, 16
      %v186 = vld [vmem:[%s185] sm:$0xf]
      %v187 = vld [vmem:[%s185 + $0x4] sm:$0xf]
      %v188 = vld [vmem:[%s185 + $0x8] sm:$0xf]
      %v189 = vld [vmem:[%s185 + $0xc] sm:$0xf]
      %s190 = scalar_lea.vmem %s1, 32
      %v191 = vld [vmem:[%s190] sm:$0xf]
      %v192 = vld [vmem:[%s190 + $0x4] sm:$0xf]
      %v193 = vld [vmem:[%s190 + $0x8] sm:$0xf]
      %v194 = vld [vmem:[%s190 + $0xc] sm:$0xf]
      %s195 = scalar_lea.vmem %s1, 48
      %v196 = vld [vmem:[%s195] sm:$0xf]
      %v197 = vld [vmem:[%s195 + $0x4] sm:$0xf]
      %v198 = vld [vmem:[%s195 + $0x8] sm:$0xf]
      %v199 = vld [vmem:[%s195 + $0xc] sm:$0xf]
      loop: start=0, step=1, limit=17
      $region33: #{decoder_forward.4} parent=31 // loop_pre_header
        _
      $region34: #{decoder_forward.4} parent=31 // loop_header
        %s201 = sphi 0, %s205
        %p202 = scmp.ge.s32.totalorder %s201, 17
      $region35: #{decoder_forward.4} parent=31 // loop_header_branch
        %204 = sbr.rel (%p202) target = $region39
      $region36: #{decoder_forward.4} parent=31 // loop_body
        %s206 = smul.u32 %s201, 3
        %s207 = smul.addr %s206, 4
        %s208 = scalar_lea.vmem %s170, %s207
        %v209 = vld [vmem:[%s208] sm:$0xf]
        %v210 = vld [vmem:[%s208 + $0x4] sm:$0xf]
        %v211 = vld [vmem:[%s208 + $0x8] sm:$0x1]
        %v215 = vunpack.c.l.b16 %v209
        %v216 = vunpack.c.l.b16 %v210
        %v217 = vunpack.c.l.b16 %v211
        %v218 = vpack.c.b16 %v216, %v215
        %v219 = vpack.c.b16 %v217, %v217
        %vm220 = vsmask.f32 7424
        %v222 = vshrl.u32 %v218, 16
        %v224 = vshll.u32 %v218, 16
        %v226 = vrot.slane %v224, 1
        %v227 = vor.u32 %v222, %v226
        %v229 = vshll.u32 %v219, 16
        %v231 = vrot.slane %v229, 1
        %v232 = vsel %vm220, %v227, %v231
        %v233 = vshrl.u32 %v219, 16
        %v239 = vunpack.c.l.b16 %v186
        %v240 = vunpack.c.l.b16 %v187
        %v241 = vunpack.c.l.b16 %v188
        %v242 = vunpack.c.l.b16 %v189
        %v243 = vpack.c.b16 %v240, %v239
        %v244 = vpack.c.b16 %v242, %v241
        %vm247 = vcmask 261120
        %v249 = vsel %vm247, %v232, 0
        %v252 = vsel %vm247, %v233, 0
        %254 = vmatpush.bf16.msra.mxu0 0
        %255 = vmatpush.bf16.msra.mxu0 0
        %256 = vmatpush.bf16.msra.mxu0 0
        %257 = vmatpush.bf16.msra.mxu0 0
        %258 = vmatpush.bf16.msra.mxu0 0
        %259 = vmatpush.bf16.msra.mxu0 0
        %260 = vmatpush.bf16.msra.mxu0 %v244
        %261 = vmatpush.bf16.msra.mxu0 %v243
        %262 = vmatmul.bf16.gmra.mxu0 %v249
        %v263 = vpop.f32.mrf.mxu0
        %v264 = vadd.f32 0.0, %v263
        %v265 = vpop.f32.mrf.mxu0
        %v266 = vadd.f32 0.0, %v265
        %267 = vmatmul.bf16.gmra.mxu0 %v252
        %v268 = vpop.f32.mrf.mxu0
        %v269 = vadd.f32 0.0, %v268
        %v270 = vpop.f32.mrf.mxu0
        %271 = vdwg.mxu0
        %v276 = vunpack.c.l.b16 %v181
        %v277 = vunpack.c.l.b16 %v182
        %v278 = vunpack.c.l.b16 %v183
        %v279 = vunpack.c.l.b16 %v184
        %v280 = vpack.c.b16 %v277, %v276
        %v281 = vpack.c.b16 %v279, %v278
        %v284 = vsel %vm247, %v218, 0
        %v286 = vsel %vm247, %v219, 0
        %288 = vmatpush.bf16.msra.mxu0 0
        %289 = vmatpush.bf16.msra.mxu0 0
        %290 = vmatpush.bf16.msra.mxu0 0
        %291 = vmatpush.bf16.msra.mxu0 0
        %292 = vmatpush.bf16.msra.mxu0 0
        %293 = vmatpush.bf16.msra.mxu0 0
        %294 = vmatpush.bf16.msra.mxu0 %v281
        %295 = vmatpush.bf16.msra.mxu0 %v280
        %296 = vmatmul.bf16.gmra.mxu0 %v284
        %v297 = vpop.f32.mrf.mxu0
        %v298 = vadd.f32 %v264, %v297
        %v299 = vpop.f32.mrf.mxu0
        %v300 = vadd.f32 %v266, %v299
        %301 = vmatmul.bf16.gmra.mxu0 %v286
        %v302 = vpop.f32.mrf.mxu0
        %v303 = vadd.f32 %v269, %v302
        %v304 = vpop.f32.mrf.mxu0
        %305 = vdwg.mxu0
        %s306 = sadd.s32 %s201, 1
        %s307 = smul.u32 %s306, 3
        %s308 = smul.addr %s307, 4
        %s309 = scalar_lea.vmem %s170, %s308
        %v310 = vld [vmem:[%s309] sm:$0xf]
        %v311 = vld [vmem:[%s309 + $0x4] sm:$0xf]
        %v312 = vld [vmem:[%s309 + $0x8] sm:$0x1]
        %v316 = vunpack.c.l.b16 %v310
        %v317 = vunpack.c.l.b16 %v311
        %v318 = vunpack.c.l.b16 %v312
        %v319 = vpack.c.b16 %v317, %v316
        %v320 = vpack.c.b16 %v318, %v318
        %v325 = vunpack.c.l.b16 %v191
        %v326 = vunpack.c.l.b16 %v192
        %v327 = vunpack.c.l.b16 %v193
        %v328 = vunpack.c.l.b16 %v194
        %v329 = vpack.c.b16 %v326, %v325
        %v330 = vpack.c.b16 %v328, %v327
        %v334 = vsel %vm247, %v319, 0
        %v337 = vsel %vm247, %v320, 0
        %339 = vmatpush.bf16.msra.mxu0 0
        %340 = vmatpush.bf16.msra.mxu0 0
        %341 = vmatpush.bf16.msra.mxu0 0
        %342 = vmatpush.bf16.msra.mxu0 0
        %343 = vmatpush.bf16.msra.mxu0 0
        %344 = vmatpush.bf16.msra.mxu0 0
        %345 = vmatpush.bf16.msra.mxu0 %v330
        %346 = vmatpush.bf16.msra.mxu0 %v329
        %347 = vmatmul.bf16.gmra.mxu0 %v334
        %v348 = vpop.f32.mrf.mxu0
        %v349 = vadd.f32 0.0, %v348
        %v350 = vpop.f32.mrf.mxu0
        %v351 = vadd.f32 0.0, %v350
        %352 = vmatmul.bf16.gmra.mxu0 %v337
        %v353 = vpop.f32.mrf.mxu0
        %v354 = vadd.f32 0.0, %v353
        %v355 = vpop.f32.mrf.mxu0
        %356 = vdwg.mxu0
        %v357 = vadd.f32 %v298, %v349
        %v358 = vadd.f32 %v300, %v351
        %v359 = vadd.f32 %v303, %v354
        %v360 = vshrl.u32 %v319, 16
        %v362 = vshll.u32 %v319, 16
        %v364 = vrot.slane %v362, 1
        %v365 = vor.u32 %v360, %v364
        %v366 = vshll.u32 %v320, 16
        %v368 = vrot.slane %v366, 1
        %v369 = vsel %vm220, %v365, %v368
        %v370 = vshrl.u32 %v320, 16
        %v376 = vunpack.c.l.b16 %v196
        %v377 = vunpack.c.l.b16 %v197
        %v378 = vunpack.c.l.b16 %v198
        %v379 = vunpack.c.l.b16 %v199
        %v380 = vpack.c.b16 %v377, %v376
        %v381 = vpack.c.b16 %v379, %v378
        %v385 = vsel %vm247, %v369, 0
        %v388 = vsel %vm247, %v370, 0
        %390 = vmatpush.bf16.msra.mxu0 0
        %391 = vmatpush.bf16.msra.mxu0 0
        %392 = vmatpush.bf16.msra.mxu0 0
        %393 = vmatpush.bf16.msra.mxu0 0
        %394 = vmatpush.bf16.msra.mxu0 0
        %395 = vmatpush.bf16.msra.mxu0 0
        %396 = vmatpush.bf16.msra.mxu0 %v381
        %397 = vmatpush.bf16.msra.mxu0 %v380
        %398 = vmatmul.bf16.gmra.mxu0 %v385
        %v399 = vpop.f32.mrf.mxu0
        %v400 = vadd.f32 0.0, %v399
        %v401 = vpop.f32.mrf.mxu0
        %v402 = vadd.f32 0.0, %v401
        %403 = vmatmul.bf16.gmra.mxu0 %v388
        %v404 = vpop.f32.mrf.mxu0
        %v405 = vadd.f32 0.0, %v404
        %v406 = vpop.f32.mrf.mxu0
        %407 = vdwg.mxu0
        %v408 = vadd.f32 %v357, %v400
        %v409 = vadd.f32 %v358, %v402
        %v410 = vadd.f32 %v359, %v405
        %v412 = vperm.slane %v180, 0
        %v414 = vadd.f32 %v408, %v412
        %v415 = vadd.f32 %v409, %v412
        %v416 = vadd.f32 %v410, %v412
        %v417 = vmax.f32 %v414, 0.0
        %v418 = vmax.f32 %v415, 0.0
        %v419 = vmax.f32 %v416, 0.0
        %v420 = vpack.c.bf16 %v417, %v417
        %v421 = vpack.c.bf16 %v418, %v418
        %v422 = vpack.c.bf16 %v419, %v419
        %s423 = smul.addr %s206, 4
        %s424 = scalar_lea.vmem %s177, %s423
        %425 = vst [vmem:[%s424] sm:$0xf] %v420
        %426 = vst [vmem:[%s424 + $0x4] sm:$0xf] %v421
        %vm427 = vcmask 1040384
        %vm428 = vsmask.f32 256
        %vm429 = vmand %vm427, %vm428
        %v430 = vld [vmem:[%s424 + $0x8] sm:$0x1]
        %v431 = vsel %vm429, %v422, %v430
        %432 = vst [vmem:[%s424 + $0x8] sm:$0x1] %v431
      $region37: #{decoder_forward.4} parent=31 // loop_footer
        %s205 = sadd.s32 1, %s201
      $region38: #{decoder_forward.4} parent=31 // loop_footer_branch
        %200 = sbr.rel target = $region34
      $region39: #{decoder_forward.4} parent=31 // loop_exit
        _
      %s433 = smul.u32 17, %s14
      %p434 = scmp.lt.s32.totalorder %s433, 33
      %s435 = scalar_select %p434, %s433, 33
      %s436 = smul.addr %s435, 3
      %s437 = smul.addr %s436, 4
      %s438 = scalar_lea.vmem %s3, %s437
      // Predicated region
      $region40: #{decoder_forward.4} parent=31 // pred_check
        %p439 = pneg %p100
      $region41: #{decoder_forward.4} parent=31 // pred_check_branch
        %441 = sbr.rel (%p439) target = $region43
      $region42: #{decoder_forward.4} parent=31 // pred_region
        %s442 = smul.u32 17, %s14
      $region43: #{decoder_forward.4} parent=31 // pred_fallthru
        _
    $region32: #{decoder_forward.4} parent=5 // pred_fallthru
      _
    %p443 = scmp.le.s32.totalorder 2, %s9
    // Predicated region
    $region44: #{decoder_forward.4} parent=5 // pred_check
      %p444 = pneg %p443
    $region45: #{decoder_forward.4} parent=5 // pred_check_branch
      %446 = sbr.rel (%p444) target = $region47
    $region46: #{decoder_forward.4} parent=5 // pred_region
      %s447 = ssub.s32 %s9, 2
      // Predicated region
      $region48: #{decoder_forward.4} parent=46 // pred_check
        %p448 = pneg %p106
      $region49: #{decoder_forward.4} parent=46 // pred_check_branch
        %450 = sbr.rel (%p448) target = $region51
      $region50: #{decoder_forward.4} parent=46 // pred_region
        %s451 = smul.u32 17, %s15
        %p452 = scmp.lt.s32.totalorder %s451, 33
        %s453 = scalar_select %p452, %s451, 33
        %s454 = smul.addr %s453, 3
        %s455 = smul.addr %s454, 4
        %s456 = scalar_lea.vmem %s3, %s455
      $region51: #{decoder_forward.4} parent=46 // pred_fallthru
        _
    $region47: #{decoder_forward.4} parent=5 // pred_fallthru
      _
  $region6: #{decoder_forward.4} parent=0 // loop_footer
    %s13 = sadd.s32 1, %s9
  $region7: #{decoder_forward.4} parent=0 // loop_footer_branch
    %8 = sbr.rel target = $region3
  $region8: #{decoder_forward.4} parent=0 // loop_exit
    _

// kernel: decoder_forward.5
$region0: #{decoder_forward.5}
  #allocation0 [shape = 'u32[]', space=smem, size = 0x4, offset = 0x4, fixed_abs, tag = 'smem constant byte address 0x4 - core index']
  #allocation1 [shape = 'u32[72,128]{1,0:T(1,128)}', space=vmem, size = 0x9000, scoped, tag = 'internal scratch']
  %s0 = inlined_call_operand.vmem [shape: bf16[68,34,32], index: 0, kind: input, shape index: {}]
  %s1 = inlined_call_operand.vmem [shape: bf16[3,3,32,3], index: 1, kind: input, shape index: {}]
  %s2 = inlined_call_operand.vmem [shape: f32[1,3], index: 2, kind: input, shape index: {}]
  %s3 = inlined_call_operand.vmem [shape: f32[64,32,3], index: 3, kind: output, shape index: {}]
  %s4 = sld [smem:[#allocation0]]
  $region52: #{decoder_forward.5} parent=0
    _
  %s6 = ssub.s32 1, %s4
  %s7 = scalar_select 0, %s6, %s4
  loop: start=0, step=1, limit=4
  $region2: #{decoder_forward.5} parent=0 // loop_pre_header
    _
  $region3: #{decoder_forward.5} parent=0 // loop_header
    %s9 = sphi 0, %s13
    %p10 = scmp.ge.s32.totalorder %s9, 4
    %s19 = sphi 0, %s21
    %s22 = sphi 0, %s19
    %s23 = sphi 0, %s22
    %s39 = sphi 0, %s23
    %s43 = sphi 0, %s43
    %s45 = sphi 0, %s43
    %s46 = sphi 0, %s45
    %s60 = sphi 0, %s46
    %s64 = sphi 0, %s64
    %s66 = sphi 0, %s64
    %s67 = sphi 0, %s66
    %s81 = sphi 0, %s67
    %s87 = sphi 0, %s89
    %s90 = sphi 0, %s87
    %s91 = sphi 0, %s90
    %s107 = sphi 0, %s91
  $region4: #{decoder_forward.5} parent=0 // loop_header_branch
    %12 = sbr.rel (%p10) target = $region8
  $region5: #{decoder_forward.5} parent=0 // loop_body
    %s14 = ssub.s32 %s9, 1
    %s15 = ssub.s32 %s9, 2
    %s16 = sadd.s32 %s9, 1
    %s17 = ssub.s32 %s9, %s16
    %p18 = scmp.eq.s32.totalorder %s17, 0
    %s20 = sadd.s32 %s19, 1
    %s21 = scalar_select %p18, %s19, %s20
    %p24 = pneg %p18
    %p25 = scmp.eq.s32.totalorder %s9, 1
    %p26 = por %p24, %p25
    %p27 = scmp.ne.s32.totalorder %s19, %s22
    %p28 = scmp.eq.s32.totalorder %s9, 0
    %p29 = por %p27, %p28
    %p30 = scmp.ne.s32.totalorder %s19, %s22
    %p31 = scmp.eq.s32.totalorder %s14, 1
    %p32 = por %p30, %p31
    %p33 = scmp.ne.s32.totalorder %s22, %s23
    %p34 = scmp.eq.s32.totalorder %s14, 0
    %p35 = por %p33, %p34
    %p36 = scmp.ne.s32.totalorder %s22, %s23
    %p37 = scmp.eq.s32.totalorder %s15, 1
    %p38 = por %p36, %p37
    %p40 = scmp.ne.s32.totalorder %s23, %s39
    %p41 = scmp.eq.s32.totalorder %s15, 0
    %p42 = por %p40, %p41
    %s44 = sadd.s32 %s43, 1
    %p47 = scmp.eq.s32.totalorder %s9, 1
    %p48 = scmp.ne.s32.totalorder %s43, %s45
    %p49 = scmp.eq.s32.totalorder %s9, 0
    %p50 = por %p48, %p49
    %p51 = scmp.ne.s32.totalorder %s43, %s45
    %p52 = scmp.eq.s32.totalorder %s14, 1
    %p53 = por %p51, %p52
    %p54 = scmp.ne.s32.totalorder %s45, %s46
    %p55 = scmp.eq.s32.totalorder %s14, 0
    %p56 = por %p54, %p55
    %p57 = scmp.ne.s32.totalorder %s45, %s46
    %p58 = scmp.eq.s32.totalorder %s15, 1
    %p59 = por %p57, %p58
    %p61 = scmp.ne.s32.totalorder %s46, %s60
    %p62 = scmp.eq.s32.totalorder %s15, 0
    %p63 = por %p61, %p62
    %s65 = sadd.s32 %s64, 1
    %p68 = scmp.eq.s32.totalorder %s9, 1
    %p69 = scmp.ne.s32.totalorder %s64, %s66
    %p70 = scmp.eq.s32.totalorder %s9, 0
    %p71 = por %p69, %p70
    %p72 = scmp.ne.s32.totalorder %s64, %s66
    %p73 = scmp.eq.s32.totalorder %s14, 1
    %p74 = por %p72, %p73
    %p75 = scmp.ne.s32.totalorder %s66, %s67
    %p76 = scmp.eq.s32.totalorder %s14, 0
    %p77 = por %p75, %p76
    %p78 = scmp.ne.s32.totalorder %s66, %s67
    %p79 = scmp.eq.s32.totalorder %s15, 1
    %p80 = por %p78, %p79
    %p82 = scmp.ne.s32.totalorder %s67, %s81
    %p83 = scmp.eq.s32.totalorder %s15, 0
    %p84 = por %p82, %p83
    %s85 = ssub.s32 %s9, %s16
    %p86 = scmp.eq.s32.totalorder %s85, 0
    %s88 = sadd.s32 %s87, 1
    %s89 = scalar_select %p86, %s87, %s88
    %p92 = pneg %p86
    %p93 = scmp.eq.s32.totalorder %s9, 1
    %p94 = por %p92, %p93
    %p95 = scmp.ne.s32.totalorder %s87, %s90
    %p96 = scmp.eq.s32.totalorder %s9, 0
    %p97 = por %p95, %p96
    %p98 = scmp.ne.s32.totalorder %s87, %s90
    %p99 = scmp.eq.s32.totalorder %s14, 1
    %p100 = por %p98, %p99
    %p101 = scmp.ne.s32.totalorder %s90, %s91
    %p102 = scmp.eq.s32.totalorder %s14, 0
    %p103 = por %p101, %p102
    %p104 = scmp.ne.s32.totalorder %s90, %s91
    %p105 = scmp.eq.s32.totalorder %s15, 1
    %p106 = por %p104, %p105
    %p108 = scmp.ne.s32.totalorder %s91, %s107
    %p109 = scmp.eq.s32.totalorder %s15, 0
    %p110 = por %p108, %p109
    %p111 = scmp.le.s32.totalorder 1, %s9
    %p112 = scmp.lt.s32.totalorder %s9, 3
    %p113 = pnand %p111, %p112
    %p114 = pneg %p113
    // Predicated region
    $region9: #{decoder_forward.5} parent=5 // pred_check
      _
    $region10: #{decoder_forward.5} parent=5 // pred_check_branch
      %116 = sbr.rel (%p113) target = $region12
    $region11: #{decoder_forward.5} parent=5 // pred_region
      %s117 = ssub.s32 %s9, 1
      // Predicated region
      $region13: #{decoder_forward.5} parent=11 // pred_check
        %p118 = pneg %p56
      $region14: #{decoder_forward.5} parent=11 // pred_check_branch
        %120 = sbr.rel (%p118) target = $region16
      $region15: #{decoder_forward.5} parent=11 // pred_region
        _
      $region16: #{decoder_forward.5} parent=11 // pred_fallthru
        _
      // Predicated region
      $region17: #{decoder_forward.5} parent=11 // pred_check
        %p121 = pneg %p77
      $region18: #{decoder_forward.5} parent=11 // pred_check_branch
        %123 = sbr.rel (%p121) target = $region20
      $region19: #{decoder_forward.5} parent=11 // pred_region
        _
      $region20: #{decoder_forward.5} parent=11 // pred_fallthru
        _
    $region12: #{decoder_forward.5} parent=5 // pred_fallthru
      _
    %p124 = scmp.lt.s32.totalorder %s9, 2
    // Predicated region
    $region21: #{decoder_forward.5} parent=5 // pred_check
      %p125 = pneg %p124
    $region22: #{decoder_forward.5} parent=5 // pred_check_branch
      %127 = sbr.rel (%p125) target = $region24
    $region23: #{decoder_forward.5} parent=5 // pred_region
      // Predicated region
      $region25: #{decoder_forward.5} parent=23 // pred_check
        %p128 = pneg %p29
      $region26: #{decoder_forward.5} parent=23 // pred_check_branch
        %130 = sbr.rel (%p128) target = $region28
      $region27: #{decoder_forward.5} parent=23 // pred_region
        %s131 = smul.u32 34, %s9
        %p132 = scmp.lt.s32.totalorder %s131, 67
        %s133 = scalar_select %p132, %s131, 67
        %s134 = smul.addr %s133, 5
        %s135 = smul.addr %s134, 4
        %s136 = scalar_lea.vmem %s0, %s135
        %s137 = smul.u32 34, %s9
      $region28: #{decoder_forward.5} parent=23 // pred_fallthru
        _
    $region24: #{decoder_forward.5} parent=5 // pred_fallthru
      _
    %p138 = scmp.le.s32.totalorder 1, %s9
    %p139 = scmp.lt.s32.totalorder %s9, 3
    %p140 = pnand %p138, %p139
    %p141 = pneg %p140
    // Predicated region
    $region29: #{decoder_forward.5} parent=5 // pred_check
      _
    $region30: #{decoder_forward.5} parent=5 // pred_check_branch
      %143 = sbr.rel (%p140) target = $region32
    $region31: #{decoder_forward.5} parent=5 // pred_region
      %s144 = ssub.s32 %s9, 1
      %s145 = smul.u32 34, %s14
      %p146 = scmp.lt.s32.totalorder %s145, 67
      %s147 = scalar_select %p146, %s145, 67
      %s148 = smul.addr %s147, 5
      %s149 = smul.addr %s148, 4
      %s150 = scalar_lea.vmem %s0, %s149
      %p151 = pneg %p35
      %p152 = pneg %p32
      %p153 = pneg %p56
      %p154 = pneg %p53
      %p155 = pneg %p77
      %p156 = pneg %p74
      %p157 = pneg %p103
      %p158 = pneg %p100
      %s159 = smul.u32 32, %s14
      %p160 = scmp.lt.s32.totalorder %s159, 63
      %s161 = scalar_select %p160, %s159, 63
      %s162 = smul.addr %s161, 4
      %s163 = smul.addr %s162, 8
      %s164 = scalar_lea.vmem %s3, %s163
      %s165 = smul.u32 34, %s14
      %p166 = scmp.lt.s32.totalorder %s165, 67
      %s167 = scalar_select %p166, %s165, 67
      %s168 = smul.addr %s167, 5
      %s169 = smul.addr %s168, 4
      %s170 = scalar_lea.vmem %s0, %s169
      %s171 = smul.u32 34, %s14
      %s172 = smul.u32 32, %s14
      %p173 = scmp.lt.s32.totalorder %s172, 63
      %s174 = scalar_select %p173, %s172, 63
      %s175 = smul.addr %s174, 4
      %s176 = smul.addr %s175, 8
      %s177 = scalar_lea.vmem %s3, %s176
      %s178 = smul.u32 32, %s14
      %v180 = vld [vmem:[%s2] sm:$0x1]
      %v181 = vld [vmem:[%s1] sm:$0xf]
      %v182 = vld [vmem:[%s1 + $0x4] sm:$0xf]
      %v183 = vld [vmem:[%s1 + $0x8] sm:$0xf]
      %v184 = vld [vmem:[%s1 + $0xc] sm:$0xf]
      %s185 = scalar_lea.vmem %s1, 16
      %v186 = vld [vmem:[%s185] sm:$0xf]
      %v187 = vld [vmem:[%s185 + $0x4] sm:$0xf]
      %v188 = vld [vmem:[%s185 + $0x8] sm:$0xf]
      %v189 = vld [vmem:[%s185 + $0xc] sm:$0xf]
      %s190 = scalar_lea.vmem %s1, 32
      %v191 = vld [vmem:[%s190] sm:$0xf]
      %v192 = vld [vmem:[%s190 + $0x4] sm:$0xf]
      %v193 = vld [vmem:[%s190 + $0x8] sm:$0xf]
      %v194 = vld [vmem:[%s190 + $0xc] sm:$0xf]
      %s195 = scalar_lea.vmem %s1, 48
      %v196 = vld [vmem:[%s195] sm:$0xf]
      %v197 = vld [vmem:[%s195 + $0x4] sm:$0xf]
      %v198 = vld [vmem:[%s195 + $0x8] sm:$0xf]
      %v199 = vld [vmem:[%s195 + $0xc] sm:$0xf]
      %s200 = scalar_lea.vmem %s1, 64
      %v201 = vld [vmem:[%s200] sm:$0xf]
      %v202 = vld [vmem:[%s200 + $0x4] sm:$0xf]
      %v203 = vld [vmem:[%s200 + $0x8] sm:$0xf]
      %v204 = vld [vmem:[%s200 + $0xc] sm:$0xf]
      %s205 = scalar_lea.vmem %s1, 80
      %v206 = vld [vmem:[%s205] sm:$0xf]
      %v207 = vld [vmem:[%s205 + $0x4] sm:$0xf]
      %v208 = vld [vmem:[%s205 + $0x8] sm:$0xf]
      %v209 = vld [vmem:[%s205 + $0xc] sm:$0xf]
      %s210 = scalar_lea.vmem %s1, 96
      %v211 = vld [vmem:[%s210] sm:$0xf]
      %v212 = vld [vmem:[%s210 + $0x4] sm:$0xf]
      %v213 = vld [vmem:[%s210 + $0x8] sm:$0xf]
      %v214 = vld [vmem:[%s210 + $0xc] sm:$0xf]
      %s215 = scalar_lea.vmem %s1, 112
      %v216 = vld [vmem:[%s215] sm:$0xf]
      %v217 = vld [vmem:[%s215 + $0x4] sm:$0xf]
      %v218 = vld [vmem:[%s215 + $0x8] sm:$0xf]
      %v219 = vld [vmem:[%s215 + $0xc] sm:$0xf]
      %s220 = scalar_lea.vmem %s1, 128
      %v221 = vld [vmem:[%s220] sm:$0xf]
      %v222 = vld [vmem:[%s220 + $0x4] sm:$0xf]
      %v223 = vld [vmem:[%s220 + $0x8] sm:$0xf]
      %v224 = vld [vmem:[%s220 + $0xc] sm:$0xf]
      loop: start=0, step=1, limit=32
      $region33: #{decoder_forward.5} parent=31 // loop_pre_header
        _
      $region34: #{decoder_forward.5} parent=31 // loop_header
        %s226 = sphi 0, %s230
        %p227 = scmp.ge.s32.totalorder %s226, 32
      $region35: #{decoder_forward.5} parent=31 // loop_header_branch
        %229 = sbr.rel (%p227) target = $region39
      $region36: #{decoder_forward.5} parent=31 // loop_body
        %s231 = smul.u32 %s226, 5
        %s232 = smul.addr %s231, 4
        %s233 = scalar_lea.vmem %s170, %s232
        %v234 = vld [vmem:[%s233] sm:$0xf]
        %v235 = vld [vmem:[%s233 + $0x4] sm:$0xf]
        %v236 = vld [vmem:[%s233 + $0x8] sm:$0xf]
        %v237 = vld [vmem:[%s233 + $0xc] sm:$0xf]
        %v238 = vld [vmem:[%s233 + $0x10] sm:$0x1]
        %v244 = vunpack.c.l.b16 %v234
        %v245 = vunpack.c.l.b16 %v235
        %v246 = vunpack.c.l.b16 %v236
        %v247 = vunpack.c.l.b16 %v237
        %v248 = vunpack.c.l.b16 %v238
        %v249 = vpack.c.b16 %v245, %v244
        %v250 = vpack.c.b16 %v247, %v246
        %v251 = vpack.c.b16 %v248, %v248
        %vm252 = vsmask.f32 7424
        %v254 = vshrl.u32 %v249, 16
        %v256 = vshll.u32 %v249, 16
        %v258 = vrot.slane %v256, 1
        %v259 = vor.u32 %v254, %v258
        %v261 = vshll.u32 %v250, 16
        %v263 = vrot.slane %v261, 1
        %v264 = vsel %vm252, %v259, %v263
        %v265 = vshrl.u32 %v250, 16
        %v267 = vor.u32 %v265, %v263
        %v269 = vshll.u32 %v251, 16
        %v271 = vrot.slane %v269, 1
        %v272 = vsel %vm252, %v267, %v271
        %v277 = vunpack.c.l.b16 %v186
        %v278 = vunpack.c.l.b16 %v187
        %v279 = vunpack.c.l.b16 %v188
        %v280 = vunpack.c.l.b16 %v189
        %v281 = vpack.c.b16 %v278, %v277
        %v282 = vpack.c.b16 %v280, %v279
        %vm285 = vcmask 261120
        %v287 = vsel %vm285, %v264, 0
        %v290 = vsel %vm285, %v272, 0
        %292 = vmatpush.bf16.msra.mxu0 0
        %293 = vmatpush.bf16.msra.mxu0 0
        %294 = vmatpush.bf16.msra.mxu0 0
        %295 = vmatpush.bf16.msra.mxu0 0
        %296 = vmatpush.bf16.msra.mxu0 0
        %297 = vmatpush.bf16.msra.mxu0 0
        %298 = vmatpush.bf16.msra.mxu0 %v282
        %299 = vmatpush.bf16.msra.mxu0 %v281
        %300 = vmatmul.bf16.gmra.mxu0 %v287
        %v301 = vpop.f32.mrf.mxu0
        %v302 = vadd.f32 0.0, %v301
        %v303 = vpop.f32.mrf.mxu0
        %v304 = vadd.f32 0.0, %v303
        %305 = vmatmul.bf16.gmra.mxu0 %v290
        %v306 = vpop.f32.mrf.mxu0
        %v307 = vadd.f32 0.0, %v306
        %v308 = vpop.f32.mrf.mxu0
        %v309 = vadd.f32 0.0, %v308
        %310 = vdwg.mxu0
        %v315 = vunpack.c.l.b16 %v181
        %v316 = vunpack.c.l.b16 %v182
        %v317 = vunpack.c.l.b16 %v183
        %v318 = vunpack.c.l.b16 %v184
        %v319 = vpack.c.b16 %v316, %v315
        %v320 = vpack.c.b16 %v318, %v317
        %v323 = vsel %vm285, %v249, 0
        %v325 = vsel %vm285, %v250, 0
        %327 = vmatpush.bf16.msra.mxu0 0
        %328 = vmatpush.bf16.msra.mxu0 0
        %329 = vmatpush.bf16.msra.mxu0 0
        %330 = vmatpush.bf16.msra.mxu0 0
        %331 = vmatpush.bf16.msra.mxu0 0
        %332 = vmatpush.bf16.msra.mxu0 0
        %333 = vmatpush.bf16.msra.mxu0 %v320
        %334 = vmatpush.bf16.msra.mxu0 %v319
        %335 = vmatmul.bf16.gmra.mxu0 %v323
        %v336 = vpop.f32.mrf.mxu0
        %v337 = vadd.f32 %v302, %v336
        %v338 = vpop.f32.mrf.mxu0
        %v339 = vadd.f32 %v304, %v338
        %340 = vmatmul.bf16.gmra.mxu0 %v325
        %v341 = vpop.f32.mrf.mxu0
        %v342 = vadd.f32 %v307, %v341
        %v343 = vpop.f32.mrf.mxu0
        %v344 = vadd.f32 %v309, %v343
        %345 = vdwg.mxu0
        %vm346 = vcmask 1046528
        %v347 = vrot.slane %v249, 1
        %v348 = vrot.slane %v250, 1
        %v349 = vsel %vm346, %v347, %v348
        %v350 = vrot.slane %v251, 1
        %v351 = vsel %vm346, %v348, %v350
        %v356 = vunpack.c.l.b16 %v191
        %v357 = vunpack.c.l.b16 %v192
        %v358 = vunpack.c.l.b16 %v193
        %v359 = vunpack.c.l.b16 %v194
        %v360 = vpack.c.b16 %v357, %v356
        %v361 = vpack.c.b16 %v359, %v358
        %v365 = vsel %vm285, %v349, 0
        %v368 = vsel %vm285, %v351, 0
        %370 = vmatpush.bf16.msra.mxu0 0
        %371 = vmatpush.bf16.msra.mxu0 0
        %372 = vmatpush.bf16.msra.mxu0 0
        %373 = vmatpush.bf16.msra.mxu0 0
        %374 = vmatpush.bf16.msra.mxu0 0
        %375 = vmatpush.bf16.msra.mxu0 0
        %376 = vmatpush.bf16.msra.mxu0 %v361
        %377 = vmatpush.bf16.msra.mxu0 %v360
        %378 = vmatmul.bf16.gmra.mxu0 %v365
        %v379 = vpop.f32.mrf.mxu0
        %v380 = vadd.f32 0.0, %v379
        %v381 = vpop.f32.mrf.mxu0
        %v382 = vadd.f32 0.0, %v381
        %383 = vmatmul.bf16.gmra.mxu0 %v368
        %v384 = vpop.f32.mrf.mxu0
        %v385 = vadd.f32 0.0, %v384
        %v386 = vpop.f32.mrf.mxu0
        %v387 = vadd.f32 0.0, %v386
        %388 = vdwg.mxu0
        %v389 = vadd.f32 %v337, %v380
        %v390 = vadd.f32 %v339, %v382
        %v391 = vadd.f32 %v342, %v385
        %v392 = vadd.f32 %v344, %v387
        %s393 = sadd.s32 %s226, 1
        %s394 = smul.u32 %s393, 5
        %s395 = smul.addr %s394, 4
        %s396 = scalar_lea.vmem %s170, %s395
        %v397 = vld [vmem:[%s396] sm:$0xf]
        %v398 = vld [vmem:[%s396 + $0x4] sm:$0xf]
        %v399 = vld [vmem:[%s396 + $0x8] sm:$0xf]
        %v400 = vld [vmem:[%s396 + $0xc] sm:$0xf]
        %v401 = vld [vmem:[%s396 + $0x10] sm:$0x1]
        %v406 = vunpack.c.l.b16 %v397
        %v407 = vunpack.c.l.b16 %v398
        %v408 = vunpack.c.l.b16 %v399
        %v409 = vunpack.c.l.b16 %v400
        %v410 = vpack.c.b16 %v407, %v406
        %v411 = vpack.c.b16 %v409, %v408
        %v416 = vunpack.c.l.b16 %v196
        %v417 = vunpack.c.l.b16 %v197
        %v418 = vunpack.c.l.b16 %v198
        %v419 = vunpack.c.l.b16 %v199
        %v420 = vpack.c.b16 %v417, %v416
        %v421 = vpack.c.b16 %v419, %v418
        %v425 = vsel %vm285, %v410, 0
        %v428 = vsel %vm285, %v411, 0
        %430 = vmatpush.bf16.msra.mxu0 0
        %431 = vmatpush.bf16.msra.mxu0 0
        %432 = vmatpush.bf16.msra.mxu0 0
        %433 = vmatpush.bf16.msra.mxu0 0
        %434 = vmatpush.bf16.msra.mxu0 0
        %435 = vmatpush.bf16.msra.mxu0 0
        %436 = vmatpush.bf16.msra.mxu0 %v421
        %437 = vmatpush.bf16.msra.mxu0 %v420
        %438 = vmatmul.bf16.gmra.mxu0 %v425
        %v439 = vpop.f32.mrf.mxu0
        %v440 = vadd.f32 0.0, %v439
        %v441 = vpop.f32.mrf.mxu0
        %v442 = vadd.f32 0.0, %v441
        %443 = vmatmul.bf16.gmra.mxu0 %v428
        %v444 = vpop.f32.mrf.mxu0
        %v445 = vadd.f32 0.0, %v444
        %v446 = vpop.f32.mrf.mxu0
        %v447 = vadd.f32 0.0, %v446
        %448 = vdwg.mxu0
        %v449 = vadd.f32 %v389, %v440
        %v450 = vadd.f32 %v390, %v442
        %v451 = vadd.f32 %v391, %v445
        %v452 = vadd.f32 %v392, %v447
        %v454 = vunpack.c.l.b16 %v401
        %v455 = vpack.c.b16 %v454, %v454
        %v456 = vshrl.u32 %v410, 16
        %v458 = vshll.u32 %v410, 16
        %v460 = vrot.slane %v458, 1
        %v461 = vor.u32 %v456, %v460
        %v462 = vshll.u32 %v411, 16
        %v464 = vrot.slane %v462, 1
        %v465 = vsel %vm252, %v461, %v464
        %v466 = vshrl.u32 %v411, 16
        %v468 = vor.u32 %v466, %v464
        %v470 = vshll.u32 %v455, 16
        %v472 = vrot.slane %v470, 1
        %v473 = vsel %vm252, %v468, %v472
        %v478 = vunpack.c.l.b16 %v201
        %v479 = vunpack.c.l.b16 %v202
        %v480 = vunpack.c.l.b16 %v203
        %v481 = vunpack.c.l.b16 %v204
        %v482 = vpack.c.b16 %v479, %v478
        %v483 = vpack.c.b16 %v481, %v480
        %v487 = vsel %vm285, %v465, 0
        %v490 = vsel %vm285, %v473, 0
        %492 = vmatpush.bf16.msra.mxu0 0
        %493 = vmatpush.bf16.msra.mxu0 0
        %494 = vmatpush.bf16.msra.mxu0 0
        %495 = vmatpush.bf16.msra.mxu0 0
        %496 = vmatpush.bf16.msra.mxu0 0
        %497 = vmatpush.bf16.msra.mxu0 0
        %498 = vmatpush.bf16.msra.mxu0 %v483
        %499 = vmatpush.bf16.msra.mxu0 %v482
        %500 = vmatmul.bf16.gmra.mxu0 %v487
        %v501 = vpop.f32.mrf.mxu0
        %v502 = vadd.f32 0.0, %v501
        %v503 = vpop.f32.mrf.mxu0
        %v504 = vadd.f32 0.0, %v503
        %505 = vmatmul.bf16.gmra.mxu0 %v490
        %v506 = vpop.f32.mrf.mxu0
        %v507 = vadd.f32 0.0, %v506
        %v508 = vpop.f32.mrf.mxu0
        %v509 = vadd.f32 0.0, %v508
        %510 = vdwg.mxu0
        %v511 = vadd.f32 %v449, %v502
        %v512 = vadd.f32 %v450, %v504
        %v513 = vadd.f32 %v451, %v507
        %v514 = vadd.f32 %v452, %v509
        %v515 = vrot.slane %v410, 1
        %v516 = vrot.slane %v411, 1
        %v517 = vsel %vm346, %v515, %v516
        %v518 = vrot.slane %v455, 1
        %v519 = vsel %vm346, %v516, %v518
        %v524 = vunpack.c.l.b16 %v206
        %v525 = vunpack.c.l.b16 %v207
        %v526 = vunpack.c.l.b16 %v208
        %v527 = vunpack.c.l.b16 %v209
        %v528 = vpack.c.b16 %v525, %v524
        %v529 = vpack.c.b16 %v527, %v526
        %v533 = vsel %vm285, %v517, 0
        %v536 = vsel %vm285, %v519, 0
        %538 = vmatpush.bf16.msra.mxu0 0
        %539 = vmatpush.bf16.msra.mxu0 0
        %540 = vmatpush.bf16.msra.mxu0 0
        %541 = vmatpush.bf16.msra.mxu0 0
        %542 = vmatpush.bf16.msra.mxu0 0
        %543 = vmatpush.bf16.msra.mxu0 0
        %544 = vmatpush.bf16.msra.mxu0 %v529
        %545 = vmatpush.bf16.msra.mxu0 %v528
        %546 = vmatmul.bf16.gmra.mxu0 %v533
        %v547 = vpop.f32.mrf.mxu0
        %v548 = vadd.f32 0.0, %v547
        %v549 = vpop.f32.mrf.mxu0
        %v550 = vadd.f32 0.0, %v549
        %551 = vmatmul.bf16.gmra.mxu0 %v536
        %v552 = vpop.f32.mrf.mxu0
        %v553 = vadd.f32 0.0, %v552
        %v554 = vpop.f32.mrf.mxu0
        %v555 = vadd.f32 0.0, %v554
        %556 = vdwg.mxu0
        %v557 = vadd.f32 %v511, %v548
        %v558 = vadd.f32 %v512, %v550
        %v559 = vadd.f32 %v513, %v553
        %v560 = vadd.f32 %v514, %v555
        %s561 = sadd.s32 %s226, 2
        %s562 = smul.u32 %s561, 5
        %s563 = smul.addr %s562, 4
        %s564 = scalar_lea.vmem %s170, %s563
        %v565 = vld [vmem:[%s564] sm:$0xf]
        %v566 = vld [vmem:[%s564 + $0x4] sm:$0xf]
        %v567 = vld [vmem:[%s564 + $0x8] sm:$0xf]
        %v568 = vld [vmem:[%s564 + $0xc] sm:$0xf]
        %v569 = vld [vmem:[%s564 + $0x10] sm:$0x1]
        %v574 = vunpack.c.l.b16 %v565
        %v575 = vunpack.c.l.b16 %v566
        %v576 = vunpack.c.l.b16 %v567
        %v577 = vunpack.c.l.b16 %v568
        %v578 = vpack.c.b16 %v575, %v574
        %v579 = vpack.c.b16 %v577, %v576
        %v584 = vunpack.c.l.b16 %v211
        %v585 = vunpack.c.l.b16 %v212
        %v586 = vunpack.c.l.b16 %v213
        %v587 = vunpack.c.l.b16 %v214
        %v588 = vpack.c.b16 %v585, %v584
        %v589 = vpack.c.b16 %v587, %v586
        %v593 = vsel %vm285, %v578, 0
        %v596 = vsel %vm285, %v579, 0
        %598 = vmatpush.bf16.msra.mxu0 0
        %599 = vmatpush.bf16.msra.mxu0 0
        %600 = vmatpush.bf16.msra.mxu0 0
        %601 = vmatpush.bf16.msra.mxu0 0
        %602 = vmatpush.bf16.msra.mxu0 0
        %603 = vmatpush.bf16.msra.mxu0 0
        %604 = vmatpush.bf16.msra.mxu0 %v589
        %605 = vmatpush.bf16.msra.mxu0 %v588
        %606 = vmatmul.bf16.gmra.mxu0 %v593
        %v607 = vpop.f32.mrf.mxu0
        %v608 = vadd.f32 0.0, %v607
        %v609 = vpop.f32.mrf.mxu0
        %v610 = vadd.f32 0.0, %v609
        %611 = vmatmul.bf16.gmra.mxu0 %v596
        %v612 = vpop.f32.mrf.mxu0
        %v613 = vadd.f32 0.0, %v612
        %v614 = vpop.f32.mrf.mxu0
        %v615 = vadd.f32 0.0, %v614
        %616 = vdwg.mxu0
        %v617 = vadd.f32 %v557, %v608
        %v618 = vadd.f32 %v558, %v610
        %v619 = vadd.f32 %v559, %v613
        %v620 = vadd.f32 %v560, %v615
        %v622 = vunpack.c.l.b16 %v569
        %v623 = vpack.c.b16 %v622, %v622
        %v624 = vshrl.u32 %v578, 16
        %v626 = vshll.u32 %v578, 16
        %v628 = vrot.slane %v626, 1
        %v629 = vor.u32 %v624, %v628
        %v630 = vshll.u32 %v579, 16
        %v632 = vrot.slane %v630, 1
        %v633 = vsel %vm252, %v629, %v632
        %v634 = vshrl.u32 %v579, 16
        %v636 = vor.u32 %v634, %v632
        %v638 = vshll.u32 %v623, 16
        %v640 = vrot.slane %v638, 1
        %v641 = vsel %vm252, %v636, %v640
        %v646 = vunpack.c.l.b16 %v216
        %v647 = vunpack.c.l.b16 %v217
        %v648 = vunpack.c.l.b16 %v218
        %v649 = vunpack.c.l.b16 %v219
        %v650 = vpack.c.b16 %v647, %v646
        %v651 = vpack.c.b16 %v649, %v648
        %v655 = vsel %vm285, %v633, 0
        %v658 = vsel %vm285, %v641, 0
        %660 = vmatpush.bf16.msra.mxu0 0
        %661 = vmatpush.bf16.msra.mxu0 0
        %662 = vmatpush.bf16.msra.mxu0 0
        %663 = vmatpush.bf16.msra.mxu0 0
        %664 = vmatpush.bf16.msra.mxu0 0
        %665 = vmatpush.bf16.msra.mxu0 0
        %666 = vmatpush.bf16.msra.mxu0 %v651
        %667 = vmatpush.bf16.msra.mxu0 %v650
        %668 = vmatmul.bf16.gmra.mxu0 %v655
        %v669 = vpop.f32.mrf.mxu0
        %v670 = vadd.f32 0.0, %v669
        %v671 = vpop.f32.mrf.mxu0
        %v672 = vadd.f32 0.0, %v671
        %673 = vmatmul.bf16.gmra.mxu0 %v658
        %v674 = vpop.f32.mrf.mxu0
        %v675 = vadd.f32 0.0, %v674
        %v676 = vpop.f32.mrf.mxu0
        %v677 = vadd.f32 0.0, %v676
        %678 = vdwg.mxu0
        %v679 = vadd.f32 %v617, %v670
        %v680 = vadd.f32 %v618, %v672
        %v681 = vadd.f32 %v619, %v675
        %v682 = vadd.f32 %v620, %v677
        %v683 = vrot.slane %v578, 1
        %v684 = vrot.slane %v579, 1
        %v685 = vsel %vm346, %v683, %v684
        %v686 = vrot.slane %v623, 1
        %v687 = vsel %vm346, %v684, %v686
        %v692 = vunpack.c.l.b16 %v221
        %v693 = vunpack.c.l.b16 %v222
        %v694 = vunpack.c.l.b16 %v223
        %v695 = vunpack.c.l.b16 %v224
        %v696 = vpack.c.b16 %v693, %v692
        %v697 = vpack.c.b16 %v695, %v694
        %v701 = vsel %vm285, %v685, 0
        %v704 = vsel %vm285, %v687, 0
        %706 = vmatpush.bf16.msra.mxu0 0
        %707 = vmatpush.bf16.msra.mxu0 0
        %708 = vmatpush.bf16.msra.mxu0 0
        %709 = vmatpush.bf16.msra.mxu0 0
        %710 = vmatpush.bf16.msra.mxu0 0
        %711 = vmatpush.bf16.msra.mxu0 0
        %712 = vmatpush.bf16.msra.mxu0 %v697
        %713 = vmatpush.bf16.msra.mxu0 %v696
        %714 = vmatmul.bf16.gmra.mxu0 %v701
        %v715 = vpop.f32.mrf.mxu0
        %v716 = vadd.f32 0.0, %v715
        %v717 = vpop.f32.mrf.mxu0
        %v718 = vadd.f32 0.0, %v717
        %719 = vmatmul.bf16.gmra.mxu0 %v704
        %v720 = vpop.f32.mrf.mxu0
        %v721 = vadd.f32 0.0, %v720
        %v722 = vpop.f32.mrf.mxu0
        %v723 = vadd.f32 0.0, %v722
        %724 = vdwg.mxu0
        %v725 = vadd.f32 %v679, %v716
        %v726 = vadd.f32 %v680, %v718
        %v727 = vadd.f32 %v681, %v721
        %v728 = vadd.f32 %v682, %v723
        %v730 = vperm.slane %v180, 0
        %v732 = vadd.f32 %v725, %v730
        %v733 = vadd.f32 %v726, %v730
        %v734 = vadd.f32 %v727, %v730
        %v735 = vadd.f32 %v728, %v730
        %v736 = vxor.u32 %v732, 2147483648
        %v737 = vxor.u32 %v733, 2147483648
        %v738 = vxor.u32 %v734, 2147483648
        %v739 = vxor.u32 %v735, 2147483648
        %v740 = vmul.f32 %v736, 1.442695
        %v741 = vpow.pop %v740
        %v742 = vmul.f32 %v737, 1.442695
        %v743 = vpow.pop %v742
        %v744 = vmul.f32 %v738, 1.442695
        %v745 = vpow.pop %v744
        %v746 = vmul.f32 %v739, 1.442695
        %v747 = vpow.pop %v746
        %v748 = vadd.f32 %v741, 1.0
        %v749 = vadd.f32 %v743, 1.0
        %v750 = vadd.f32 %v745, 1.0
        %v751 = vadd.f32 %v747, 1.0
        %v752 = vrcp.pop %v748
        %v753 = vmul.f32 %v748, %v752
        %v754 = vsub.f32 1.0, %v753
        %v755 = vmul.f32 %v752, %v754
        %v756 = vadd.f32 %v752, %v755
        %vm757 = vweird.f32 %v748
        %vm758 = vweird.f32 %v752
        %vm759 = vmor %vm757, %vm758
        %v760 = vsel %vm759, %v752, %v756
        %v761 = vand.u32 2147483647, %v748
        %vm762 = vcmp.eq.f32.partialorder %v761, 8.507059e+37
        %v763 = vand.u32 %v748, 2147483648
        %v764 = vor.u32 1.1754944e-38, %v763
        %v765 = vsel %vm762, %v764, %v760
        %v766 = vmul.f32 1.0, %v765
        %v767 = vrcp.pop %v749
        %v768 = vmul.f32 %v749, %v767
        %v769 = vsub.f32 1.0, %v768
        %v770 = vmul.f32 %v767, %v769
        %v771 = vadd.f32 %v767, %v770
        %vm772 = vweird.f32 %v749
        %vm773 = vweird.f32 %v767
        %vm774 = vmor %vm772, %vm773
        %v775 = vsel %vm774, %v767, %v771
        %v776 = vand.u32 2147483647, %v749
        %vm777 = vcmp.eq.f32.partialorder %v776, 8.507059e+37
        %v778 = vand.u32 %v749, 2147483648
        %v779 = vor.u32 1.1754944e-38, %v778
        %v780 = vsel %vm777, %v779, %v775
        %v781 = vmul.f32 1.0, %v780
        %v782 = vrcp.pop %v750
        %v783 = vmul.f32 %v750, %v782
        %v784 = vsub.f32 1.0, %v783
        %v785 = vmul.f32 %v782, %v784
        %v786 = vadd.f32 %v782, %v785
        %vm787 = vweird.f32 %v750
        %vm788 = vweird.f32 %v782
        %vm789 = vmor %vm787, %vm788
        %v790 = vsel %vm789, %v782, %v786
        %v791 = vand.u32 2147483647, %v750
        %vm792 = vcmp.eq.f32.partialorder %v791, 8.507059e+37
        %v793 = vand.u32 %v750, 2147483648
        %v794 = vor.u32 1.1754944e-38, %v793
        %v795 = vsel %vm792, %v794, %v790
        %v796 = vmul.f32 1.0, %v795
        %v797 = vrcp.pop %v751
        %v798 = vmul.f32 %v751, %v797
        %v799 = vsub.f32 1.0, %v798
        %v800 = vmul.f32 %v797, %v799
        %v801 = vadd.f32 %v797, %v800
        %vm802 = vweird.f32 %v751
        %vm803 = vweird.f32 %v797
        %vm804 = vmor %vm802, %vm803
        %v805 = vsel %vm804, %v797, %v801
        %v806 = vand.u32 2147483647, %v751
        %vm807 = vcmp.eq.f32.partialorder %v806, 8.507059e+37
        %v808 = vand.u32 %v751, 2147483648
        %v809 = vor.u32 1.1754944e-38, %v808
        %v810 = vsel %vm807, %v809, %v805
        %v811 = vmul.f32 1.0, %v810
        %s812 = smul.u32 %s226, 32
        %s813 = scalar_lea.vmem %s177, %s812
        %vm814 = vcmask 23552
        %815 = vst.msk [vmem:[%s813] sm:$0xff] %vm814, %v766
        %816 = vst.msk [vmem:[%s813 + $0x8] sm:$0xff] %vm814, %v781
        %817 = vst.msk [vmem:[%s813 + $0x10] sm:$0xff] %vm814, %v796
        %818 = vst.msk [vmem:[%s813 + $0x18] sm:$0xff] %vm814, %v811
      $region37: #{decoder_forward.5} parent=31 // loop_footer
        %s230 = sadd.s32 1, %s226
      $region38: #{decoder_forward.5} parent=31 // loop_footer_branch
        %225 = sbr.rel target = $region34
      $region39: #{decoder_forward.5} parent=31 // loop_exit
        _
      %s819 = smul.u32 32, %s14
      %p820 = scmp.lt.s32.totalorder %s819, 63
      %s821 = scalar_select %p820, %s819, 63
      %s822 = smul.addr %s821, 4
      %s823 = smul.addr %s822, 8
      %s824 = scalar_lea.vmem %s3, %s823
      // Predicated region
      $region40: #{decoder_forward.5} parent=31 // pred_check
        %p825 = pneg %p100
      $region41: #{decoder_forward.5} parent=31 // pred_check_branch
        %827 = sbr.rel (%p825) target = $region43
      $region42: #{decoder_forward.5} parent=31 // pred_region
        %s828 = smul.u32 32, %s14
      $region43: #{decoder_forward.5} parent=31 // pred_fallthru
        _
    $region32: #{decoder_forward.5} parent=5 // pred_fallthru
      _
    %p829 = scmp.le.s32.totalorder 2, %s9
    // Predicated region
    $region44: #{decoder_forward.5} parent=5 // pred_check
      %p830 = pneg %p829
    $region45: #{decoder_forward.5} parent=5 // pred_check_branch
      %832 = sbr.rel (%p830) target = $region47
    $region46: #{decoder_forward.5} parent=5 // pred_region
      %s833 = ssub.s32 %s9, 2
      // Predicated region
      $region48: #{decoder_forward.5} parent=46 // pred_check
        %p834 = pneg %p106
      $region49: #{decoder_forward.5} parent=46 // pred_check_branch
        %836 = sbr.rel (%p834) target = $region51
      $region50: #{decoder_forward.5} parent=46 // pred_region
        %s837 = smul.u32 32, %s15
        %p838 = scmp.lt.s32.totalorder %s837, 63
        %s839 = scalar_select %p838, %s837, 63
        %s840 = smul.addr %s839, 4
        %s841 = smul.addr %s840, 8
        %s842 = scalar_lea.vmem %s3, %s841
      $region51: #{decoder_forward.5} parent=46 // pred_fallthru
        _
    $region47: #{decoder_forward.5} parent=5 // pred_fallthru
      _
  $region6: #{decoder_forward.5} parent=0 // loop_footer
    %s13 = sadd.s32 1, %s9
  $region7: #{decoder_forward.5} parent=0 // loop_footer_branch
    %8 = sbr.rel target = $region3
  $region8: #{decoder_forward.5} parent=0 // loop_exit
    _

</llo_original>
